<compile_context>
chip_gen: v5e
topology: v5e:2x2
jax: 0.10.0
libtpu: 0.0.40
codegen_flags: <defaults>
</compile_context>

<pallas_src>
import functools

import numpy as np
import jax
import jax.numpy as jnp
from jax import lax
from jax.experimental import pallas as pl
from jax.experimental.pallas import tpu as pltpu

EPS = 1e-5
EPAD = 128          # lane padding of the per-grid-step time-embedding block


def _silu(v):
    return v * jax.nn.sigmoid(v)


def _shift_lanes(v, offset):
    """out[..., t] = v[..., t + offset] (circular; callers mask wrapped lanes).

    pltpu.roll follows jnp.roll semantics (positive shift moves data toward
    higher indices), so a forward look-ahead of `offset` is a roll by -offset.
    """
    length = v.shape[-1]
    shift = (-offset) % length
    if shift == 0:
        return v
    return pltpu.roll(v, shift, axis=v.ndim - 1)


def _maxpool_pack(x_ref, sel_ref, Nb, W):
    """MaxPool2d(2) + pack Nb samples onto the lane axis.

    x_ref block: (Nb, Cin, H*W) raw flat-NCHW rows.  sel_ref: (Nb, H*W, L)
    0/1 selection matrices (host precomputed) gathering the 2x2-window
    origins of sample nb into lanes [nb*S, (nb+1)*S).
    """
    xr = x_ref[...]                                   # (Nb, Cin, H*W)
    m1 = jnp.maximum(xr, _shift_lanes(xr, 1))         # pair max along w
    m2 = jnp.maximum(m1, _shift_lanes(m1, W))         # then along h -> 2x2 max
    acc = None
    for nb in range(Nb):
        part = jnp.dot(m2[nb], sel_ref[nb], preferred_element_type=jnp.float32)
        acc = part if acc is None else acc + part
    return acc                                        # (Cin, L)


def _conv3x3(x, w_ref, tap_masks, Wp):
    """'SAME' 3x3 conv, no bias.  x: (Ci, L) f32 with Nb samples packed on the
    lane axis; w_ref: (Co, 9*Ci) with (ky,kx) outer / Ci inner.  The patch
    matrix is built with lane rolls + boundary masks (masks also kill
    cross-sample / wrap-around leakage), then a single MXU matmul."""
    pieces = []
    r = 0
    for dy in (-1, 0, 1):
        for dx in (-1, 0, 1):
            off = dy * Wp + dx
            v = _shift_lanes(x, off)
            m = tap_masks[r]
            pieces.append(v if m is None else v * m)
            r += 1
    patches = jnp.concatenate(pieces, axis=0)         # (9*Ci, L)
    # TODO(synk): bf16 operands (f32 accumulation) on v6e/v7x once the f32
    # reference tolerance is relaxed.
    return jnp.dot(w_ref[...], patches, preferred_element_type=jnp.float32)


def _gnorm(v, g_ref, b_ref, smasks, Nb, extra_cols=None):
    """GroupNorm(num_groups=1) per packed sample.  Two-pass (centered) stats;
    gamma*inv_std and beta - mean*scale are folded into one per-lane
    scale+shift map so normalization is a single fused VPU pass.  `extra_cols`
    optionally adds a per-sample (C, 1) column to the shift (time embedding)."""
    C, L = v.shape
    inv_n = 1.0 / (C * (L // Nb))
    g = g_ref[...]                                    # (C, 1)
    b = b_ref[...]                                    # (C, 1)
    scale_map = jnp.zeros_like(v)
    shift_map = jnp.zeros_like(v)
    for nb in range(Nb):
        m = smasks[nb]                                # (1, L) sample mask
        mean = jnp.sum(v * m) * inv_n
        d = (v - mean) * m
        var = jnp.sum(d * d) * inv_n
        sc = g * lax.rsqrt(var + EPS)                 # (C, 1)
        sh = b - mean * sc                            # (C, 1)
        if extra_cols is not None:
            sh = sh + extra_cols[nb]
        scale_map = scale_map + m * sc
        shift_map = shift_map + m * sh
    return v * scale_map + shift_map


def down_block_kernel(x_ref, emb_ref, pmask_ref, smask_ref, sel_ref,
                      w1_ref, g1_ref, b1_ref, w2_ref, g2_ref, b2_ref,
                      w3_ref, g3_ref, b3_ref, w4_ref, g4_ref, b4_ref,
                      o_ref, *, Nb, W, Wp):
    # Hoisted once per grid step: tap boundary masks, per-sample masks, and the
    # per-sample time-embedding columns.
    pm = pmask_ref[...]                               # (9, L)
    tap_masks = [None if r == 4 else pm[r:r + 1, :] for r in range(9)]
    sm = smask_ref[...]                               # (Nb, L)
    smasks = [sm[nb:nb + 1, :] for nb in range(Nb)]
    e = emb_ref[...]                                  # (Cout, 128); cols >= Nb pad
    emb_cols = [e[:, nb:nb + 1] for nb in range(Nb)]

    # MaxPool2d(2) directly from the raw NCHW block (single HBM read of x).
    x0 = _maxpool_pack(x_ref, sel_ref, Nb, W)         # (Cin, L)

    # DoubleConv #1 (in=Cin, out=Cin, mid=Cin, residual=True, act='silu')
    h = _conv3x3(x0, w1_ref, tap_masks, Wp)
    h = _silu(_gnorm(h, g1_ref, b1_ref, smasks, Nb))
    h = _conv3x3(h, w2_ref, tap_masks, Wp)
    h = _gnorm(h, g2_ref, b2_ref, smasks, Nb)
    x1 = _silu(x0 + h)

    # DoubleConv #2 (in=Cin, out=Cout, mid=Cout, residual=False); the time
    # embedding is folded into the final GroupNorm shift (no broadcast epilogue).
    h = _conv3x3(x1, w3_ref, tap_masks, Wp)
    h = _silu(_gnorm(h, g3_ref, b3_ref, smasks, Nb))
    h = _conv3x3(h, w4_ref, tap_masks, Wp)
    out = _gnorm(h, g4_ref, b4_ref, smasks, Nb, extra_cols=emb_cols)

    o_ref[...] = out.astype(o_ref.dtype)


def _host_constants(Nb, Hp, Wp, H, W):
    """Compile-time masks / gather matrices (pure layout metadata)."""
    S = Hp * Wp
    L = Nb * S
    HW = H * W
    t = np.arange(L)
    s = t % S
    hh = s // Wp
    ww = s % Wp
    pmask = np.zeros((9, L), np.float32)              # 3x3 tap boundary masks
    for dy in (-1, 0, 1):
        for dx in (-1, 0, 1):
            ok = ((hh + dy >= 0) & (hh + dy < Hp) &
                  (ww + dx >= 0) & (ww + dx < Wp))
            pmask[(dy + 1) * 3 + (dx + 1)] = ok.astype(np.float32)
    smask = (t // S == np.arange(Nb)[:, None]).astype(np.float32)   # (Nb, L)
    sel = np.zeros((Nb, HW, L), np.float32)           # pooled-window gather
    for nb in range(Nb):
        cols = np.arange(nb * S, (nb + 1) * S)
        sel[nb, 2 * hh[cols] * W + 2 * ww[cols], cols] = 1.0
    return jnp.asarray(pmask), jnp.asarray(smask), jnp.asarray(sel)


def down_block_forward(x_nchw, time, params):
    """x_nchw: (N, Cin, H, W) f32; time: (N, E) f32 -> (N, Cout, H/2, W/2)."""
    N, Cin, H, W = x_nchw.shape
    assert H % 2 == 0 and W % 2 == 0, "MaxPool2d(2) requires even H, W"
    Cout = params["w4"].shape[0]
    Hp, Wp = H // 2, W // 2
    S = Hp * Wp
    HW = H * W

    # Pack Nb samples per grid step so the lane width L = Nb*S is a multiple of
    # 128 (lane-dense VPU work + unmasked stores); also folds the whole batch
    # into few grid steps on single-TC v5e/v6e.
    Nb = 1
    for cand in range(1, N + 1):
        if N % cand == 0 and (cand * S) % 128 == 0:
            Nb = cand
            break
    # TODO(synk): pad the batch / spatial dim when no divisor of N gives a
    # 128-multiple lane width instead of falling back to a lane-sparse block.
    G = N // Nb
    L = Nb * S

    x_flat = x_nchw.reshape(N, Cin, HW)               # free reshape (contiguous)

    # Time embedding (SiLU -> Linear): one batched XLA matmul, then padded to a
    # 128-lane block per grid step (avoids a lane-dim-1 block DMA).
    emb = _silu(time) @ params["wl"].T + params["bl"]            # (N, Cout)
    emb_blk = jnp.zeros((Cout, G, EPAD), jnp.float32)
    emb_blk = emb_blk.at[:, :, :Nb].set(emb.T.reshape(Cout, G, Nb))
    emb_pad = emb_blk.reshape(Cout, G * EPAD)

    pmask, smask, sel = _host_constants(Nb, Hp, Wp, H, W)

    def wmat(w):   # PyTorch (O, I, 3, 3) -> (O, 9*I), (ky,kx) outer / I inner
        o, i = w.shape[0], w.shape[1]
        return jnp.transpose(w, (0, 2, 3, 1)).reshape(o, 9 * i)

    def cvec(v):   # (C,) -> (C, 1) per-channel column
        return v.reshape(-1, 1)

    args = (x_flat, emb_pad, pmask, smask, sel,
            wmat(params["w1"]), cvec(params["g1"]), cvec(params["b1"]),
            wmat(params["w2"]), cvec(params["g2"]), cvec(params["b2"]),
            wmat(params["w3"]), cvec(params["g3"]), cvec(params["b3"]),
            wmat(params["w4"]), cvec(params["g4"]), cvec(params["b4"]))

    def const_spec(shape):
        # Constant across the grid.  TODO(synk): single-buffer these
        # (pipeline_mode=pl.Buffered(1)) when grids have many steps; with the
        # whole batch in one step it is irrelevant here.
        return pl.BlockSpec(shape, lambda n, _r=len(shape): (0,) * _r)

    in_specs = [
        pl.BlockSpec((Nb, Cin, HW), lambda n: (n, 0, 0)),
        pl.BlockSpec((Cout, EPAD), lambda n: (0, n)),
        const_spec((9, L)),
        const_spec((Nb, L)),
        const_spec((Nb, HW, L)),
        const_spec((Cin, 9 * Cin)), const_spec((Cin, 1)), const_spec((Cin, 1)),
        const_spec((Cin, 9 * Cin)), const_spec((Cin, 1)), const_spec((Cin, 1)),
        const_spec((Cout, 9 * Cin)), const_spec((Cout, 1)), const_spec((Cout, 1)),
        const_spec((Cout, 9 * Cout)), const_spec((Cout, 1)), const_spec((Cout, 1)),
    ]

    kernel = functools.partial(down_block_kernel, Nb=Nb, W=W, Wp=Wp)
    out = pl.pallas_call(
        kernel,
        out_shape=jax.ShapeDtypeStruct((Cout, N * S), jnp.float32),
        grid=(G,),
        in_specs=in_specs,
        out_specs=pl.BlockSpec((Cout, L), lambda n: (0, n)),
        compiler_params=pltpu.CompilerParams(
            dimension_semantics=("parallel",)),
    )(*args)

    # (Cout, N*S) lane-packed -> NCHW.  Wrapper-side layout plumbing so that
    # the kernel's output stores stay 128-lane dense (unmasked vst).
    return out.reshape(Cout, N, Hp, Wp).transpose(1, 0, 2, 3)


def ref_forward(x, time, p):
    """Pure-JAX reference mirroring the PyTorch DownBlock forward (NCHW)."""
    silu = lambda v: v * jax.nn.sigmoid(v)

    def conv(x, w):
        return jax.lax.conv_general_dilated(
            x, w, (1, 1), "SAME", dimension_numbers=("NCHW", "OIHW", "NCHW"))

    def gn(x, g, b):
        mean = jnp.mean(x, axis=(1, 2, 3), keepdims=True)
        var = jnp.mean((x - mean) ** 2, axis=(1, 2, 3), keepdims=True)
        xn = (x - mean) / jnp.sqrt(var + EPS)
        return xn * g[None, :, None, None] + b[None, :, None, None]

    N, C, H, W = x.shape
    x = x.reshape(N, C, H // 2, 2, W // 2, 2).max(axis=(3, 5))   # MaxPool2d(2)
    h = silu(gn(conv(x, p["w1"]), p["g1"], p["b1"]))
    h = gn(conv(h, p["w2"]), p["g2"], p["b2"])
    x = silu(x + h)
    h = silu(gn(conv(x, p["w3"]), p["g3"], p["b3"]))
    x = gn(conv(h, p["w4"]), p["g4"], p["b4"])
    emb = silu(time) @ p["wl"].T + p["bl"]
    return x + emb[:, :, None, None]


def init_params(key, cin, cout, emb_ch):
    ks = jax.random.split(key, 8)
    p = {
        # DoubleConv #1: in=cin, out=cin, mid=cin (residual)
        "w1": 0.2 * jax.random.normal(ks[0], (cin, cin, 3, 3), jnp.float32),
        "g1": 1.0 + 0.1 * jax.random.normal(ks[4], (cin,), jnp.float32),
        "b1": 0.1 * jax.random.normal(ks[5], (cin,), jnp.float32),
        "w2": 0.2 * jax.random.normal(ks[1], (cin, cin, 3, 3), jnp.float32),
        "g2": 1.0 + 0.1 * jax.random.normal(ks[6], (cin,), jnp.float32),
        "b2": 0.1 * jax.random.normal(ks[7], (cin,), jnp.float32),
        # DoubleConv #2: in=cin, out=cout, mid=cout
        "w3": 0.2 * jax.random.normal(ks[2], (cout, cin, 3, 3), jnp.float32),
        "g3": jnp.ones((cout,), jnp.float32),
        "b3": jnp.zeros((cout,), jnp.float32),
        "w4": 0.2 * jax.random.normal(ks[3], (cout, cout, 3, 3), jnp.float32),
        "g4": jnp.ones((cout,), jnp.float32),
        "b4": jnp.zeros((cout,), jnp.float32),
        # emb_layer: SiLU -> Linear(emb_ch -> cout)
        "wl": 0.2 * jax.random.normal(jax.random.fold_in(key, 99),
                                      (cout, emb_ch), jnp.float32),
        "bl": 0.05 * jax.random.normal(jax.random.fold_in(key, 100),
                                       (cout,), jnp.float32),
    }
    return p


if __name__ == "__main__":
    N, Cin, H, W = 2, 4, 16, 16
    Cout, E = 8, 32

    key = jax.random.PRNGKey(0)
    kx, kt, kp = jax.random.split(key, 3)
    x = jax.random.normal(kx, (N, Cin, H, W), jnp.float32)
    time = jax.random.normal(kt, (N, E), jnp.float32)
    params = init_params(kp, Cin, Cout, E)

    fwd = jax.jit(down_block_forward)
    out = jax.block_until_ready(fwd(x, time, params))

    ref = jax.block_until_ready(ref_forward(x, time, params))
    assert out.shape == (N, Cout, H // 2, W // 2), out.shape
    assert jnp.allclose(out, ref, atol=2e-4, rtol=2e-4), \
        float(jnp.max(jnp.abs(out - ref)))
    print("KERNEL_OK")
</pallas_src>

<mosaic_0001>
module attributes {stable_mosaic.version = 11 : i64} {
  func.func @down_block_kernel(%arg0: i32, %arg1: memref<2x4x256xf32, #tpu.memory_space<vmem>>, %arg2: memref<8x128xf32, #tpu.memory_space<vmem>>, %arg3: memref<9x128xf32, #tpu.memory_space<vmem>>, %arg4: memref<2x128xf32, #tpu.memory_space<vmem>>, %arg5: memref<2x256x128xf32, #tpu.memory_space<vmem>>, %arg6: memref<4x36xf32, #tpu.memory_space<vmem>>, %arg7: memref<4x1xf32, #tpu.memory_space<vmem>>, %arg8: memref<4x1xf32, #tpu.memory_space<vmem>>, %arg9: memref<4x36xf32, #tpu.memory_space<vmem>>, %arg10: memref<4x1xf32, #tpu.memory_space<vmem>>, %arg11: memref<4x1xf32, #tpu.memory_space<vmem>>, %arg12: memref<8x36xf32, #tpu.memory_space<vmem>>, %arg13: memref<8x1xf32, #tpu.memory_space<vmem>>, %arg14: memref<8x1xf32, #tpu.memory_space<vmem>>, %arg15: memref<8x72xf32, #tpu.memory_space<vmem>>, %arg16: memref<8x1xf32, #tpu.memory_space<vmem>>, %arg17: memref<8x1xf32, #tpu.memory_space<vmem>>, %arg18: memref<8x128xf32, #tpu.memory_space<vmem>>) attributes {dimension_semantics = [#tpu.dimension_semantics<parallel>], iteration_bounds = array<i64: 1>, scalar_prefetch = 0 : i64, scratch_operands = 0 : i64, tpu.core_type = #tpu.core_type<tc>, window_params = [{transform_indices = @transform_0, window_bounds = array<i64: 2, 4, 256>}, {transform_indices = @transform_1, window_bounds = array<i64: 8, 128>}, {pipeline_mode = #tpu.pipeline_mode<synchronous>, transform_indices = @transform_2, window_bounds = array<i64: 9, 128>}, {pipeline_mode = #tpu.pipeline_mode<synchronous>, transform_indices = @transform_3, window_bounds = array<i64: 2, 128>}, {pipeline_mode = #tpu.pipeline_mode<synchronous>, transform_indices = @transform_4, window_bounds = array<i64: 2, 256, 128>}, {pipeline_mode = #tpu.pipeline_mode<synchronous>, transform_indices = @transform_5, window_bounds = array<i64: 4, 36>}, {pipeline_mode = #tpu.pipeline_mode<synchronous>, transform_indices = @transform_6, window_bounds = array<i64: 4, 1>}, {pipeline_mode = #tpu.pipeline_mode<synchronous>, transform_indices = @transform_7, window_bounds = array<i64: 4, 1>}, {pipeline_mode = #tpu.pipeline_mode<synchronous>, transform_indices = @transform_8, window_bounds = array<i64: 4, 36>}, {pipeline_mode = #tpu.pipeline_mode<synchronous>, transform_indices = @transform_9, window_bounds = array<i64: 4, 1>}, {pipeline_mode = #tpu.pipeline_mode<synchronous>, transform_indices = @transform_10, window_bounds = array<i64: 4, 1>}, {pipeline_mode = #tpu.pipeline_mode<synchronous>, transform_indices = @transform_11, window_bounds = array<i64: 8, 36>}, {pipeline_mode = #tpu.pipeline_mode<synchronous>, transform_indices = @transform_12, window_bounds = array<i64: 8, 1>}, {pipeline_mode = #tpu.pipeline_mode<synchronous>, transform_indices = @transform_13, window_bounds = array<i64: 8, 1>}, {pipeline_mode = #tpu.pipeline_mode<synchronous>, transform_indices = @transform_14, window_bounds = array<i64: 8, 72>}, {pipeline_mode = #tpu.pipeline_mode<synchronous>, transform_indices = @transform_15, window_bounds = array<i64: 8, 1>}, {pipeline_mode = #tpu.pipeline_mode<synchronous>, transform_indices = @transform_16, window_bounds = array<i64: 8, 1>}, {transform_indices = @transform_17, window_bounds = array<i64: 8, 128>}]} {
    %c0 = arith.constant 0 : index
    %c0_0 = arith.constant 0 : index
    %0 = vector.load %arg3[%c0, %c0_0] : memref<9x128xf32, #tpu.memory_space<vmem>>, vector<9x128xf32>
    %1 = vector.extract_strided_slice %0 {offsets = [0, 0], sizes = [1, 128], strides = [1, 1]} : vector<9x128xf32> to vector<1x128xf32>
    %2 = vector.extract_strided_slice %0 {offsets = [1, 0], sizes = [1, 128], strides = [1, 1]} : vector<9x128xf32> to vector<1x128xf32>
    %3 = vector.extract_strided_slice %0 {offsets = [2, 0], sizes = [1, 128], strides = [1, 1]} : vector<9x128xf32> to vector<1x128xf32>
    %4 = vector.extract_strided_slice %0 {offsets = [3, 0], sizes = [1, 128], strides = [1, 1]} : vector<9x128xf32> to vector<1x128xf32>
    %5 = vector.extract_strided_slice %0 {offsets = [5, 0], sizes = [1, 128], strides = [1, 1]} : vector<9x128xf32> to vector<1x128xf32>
    %6 = vector.extract_strided_slice %0 {offsets = [6, 0], sizes = [1, 128], strides = [1, 1]} : vector<9x128xf32> to vector<1x128xf32>
    %7 = vector.extract_strided_slice %0 {offsets = [7, 0], sizes = [1, 128], strides = [1, 1]} : vector<9x128xf32> to vector<1x128xf32>
    %8 = vector.extract_strided_slice %0 {offsets = [8, 0], sizes = [1, 128], strides = [1, 1]} : vector<9x128xf32> to vector<1x128xf32>
    %c0_1 = arith.constant 0 : index
    %c0_2 = arith.constant 0 : index
    %9 = vector.load %arg4[%c0_1, %c0_2] : memref<2x128xf32, #tpu.memory_space<vmem>>, vector<2x128xf32>
    %10 = vector.extract_strided_slice %9 {offsets = [0, 0], sizes = [1, 128], strides = [1, 1]} : vector<2x128xf32> to vector<1x128xf32>
    %11 = vector.extract_strided_slice %9 {offsets = [1, 0], sizes = [1, 128], strides = [1, 1]} : vector<2x128xf32> to vector<1x128xf32>
    %c0_3 = arith.constant 0 : index
    %c0_4 = arith.constant 0 : index
    %12 = vector.load %arg2[%c0_3, %c0_4] : memref<8x128xf32, #tpu.memory_space<vmem>>, vector<8x128xf32>
    %13 = vector.extract_strided_slice %12 {offsets = [0, 0], sizes = [8, 1], strides = [1, 1]} : vector<8x128xf32> to vector<8x1xf32>
    %14 = vector.extract_strided_slice %12 {offsets = [0, 1], sizes = [8, 1], strides = [1, 1]} : vector<8x128xf32> to vector<8x1xf32>
    %c0_5 = arith.constant 0 : index
    %c0_6 = arith.constant 0 : index
    %c0_7 = arith.constant 0 : index
    %15 = vector.load %arg1[%c0_5, %c0_6, %c0_7] : memref<2x4x256xf32, #tpu.memory_space<vmem>>, vector<2x4x256xf32>
    %c255_i32 = arith.constant 255 : i32
    %16 = tpu.dynamic_rotate %15 by %c255_i32 dim 2 : vector<2x4x256xf32>, i32 -> vector<2x4x256xf32>
    %17 = arith.maximumf %15, %16 : vector<2x4x256xf32>
    %c240_i32 = arith.constant 240 : i32
    %18 = tpu.dynamic_rotate %17 by %c240_i32 dim 2 : vector<2x4x256xf32>, i32 -> vector<2x4x256xf32>
    %19 = arith.maximumf %17, %18 : vector<2x4x256xf32>
    %20 = vector.extract_strided_slice %19 {offsets = [0, 0, 0], sizes = [1, 4, 256], strides = [1, 1, 1]} : vector<2x4x256xf32> to vector<1x4x256xf32>
    %21 = vector.shape_cast %20 : vector<1x4x256xf32> to vector<4x256xf32>
    %c0_8 = arith.constant 0 : index
    %c0_9 = arith.constant 0 : index
    %c0_10 = arith.constant 0 : index
    %22 = vector.load %arg5[%c0_8, %c0_9, %c0_10] : memref<2x256x128xf32, #tpu.memory_space<vmem>>, vector<1x256x128xf32>
    %23 = vector.shape_cast %22 : vector<1x256x128xf32> to vector<256x128xf32>
    %cst = arith.constant dense<0.000000e+00> : vector<4x128xf32>
    %24 = tpu.matmul %21, %23, %cst {dimension_numbers = #tpu.dot_dimension_numbers<[1], [0], [0], [1], [0, 0, 1, 1], [], []>} : vector<4x256xf32>, vector<256x128xf32>, vector<4x128xf32> -> vector<4x128xf32>
    %25 = vector.extract_strided_slice %19 {offsets = [1, 0, 0], sizes = [1, 4, 256], strides = [1, 1, 1]} : vector<2x4x256xf32> to vector<1x4x256xf32>
    %26 = vector.shape_cast %25 : vector<1x4x256xf32> to vector<4x256xf32>
    %c1 = arith.constant 1 : index
    %c0_11 = arith.constant 0 : index
    %c0_12 = arith.constant 0 : index
    %27 = vector.load %arg5[%c1, %c0_11, %c0_12] : memref<2x256x128xf32, #tpu.memory_space<vmem>>, vector<1x256x128xf32>
    %28 = vector.shape_cast %27 : vector<1x256x128xf32> to vector<256x128xf32>
    %cst_13 = arith.constant dense<0.000000e+00> : vector<4x128xf32>
    %29 = tpu.matmul %26, %28, %cst_13 {dimension_numbers = #tpu.dot_dimension_numbers<[1], [0], [0], [1], [0, 0, 1, 1], [], []>} : vector<4x256xf32>, vector<256x128xf32>, vector<4x128xf32> -> vector<4x128xf32>
    %30 = arith.addf %24, %29 : vector<4x128xf32>
    %c9_i32 = arith.constant 9 : i32
    %31 = tpu.dynamic_rotate %30 by %c9_i32 dim 1 : vector<4x128xf32>, i32 -> vector<4x128xf32>
    %32 = vector.broadcast %1 : vector<1x128xf32> to vector<4x128xf32>
    %33 = arith.mulf %31, %32 : vector<4x128xf32>
    %c8_i32 = arith.constant 8 : i32
    %34 = tpu.dynamic_rotate %30 by %c8_i32 dim 1 : vector<4x128xf32>, i32 -> vector<4x128xf32>
    %35 = vector.broadcast %2 : vector<1x128xf32> to vector<4x128xf32>
    %36 = arith.mulf %34, %35 : vector<4x128xf32>
    %c7_i32 = arith.constant 7 : i32
    %37 = tpu.dynamic_rotate %30 by %c7_i32 dim 1 : vector<4x128xf32>, i32 -> vector<4x128xf32>
    %38 = vector.broadcast %3 : vector<1x128xf32> to vector<4x128xf32>
    %39 = arith.mulf %37, %38 : vector<4x128xf32>
    %c1_i32 = arith.constant 1 : i32
    %40 = tpu.dynamic_rotate %30 by %c1_i32 dim 1 : vector<4x128xf32>, i32 -> vector<4x128xf32>
    %41 = vector.broadcast %4 : vector<1x128xf32> to vector<4x128xf32>
    %42 = arith.mulf %40, %41 : vector<4x128xf32>
    %c127_i32 = arith.constant 127 : i32
    %43 = tpu.dynamic_rotate %30 by %c127_i32 dim 1 : vector<4x128xf32>, i32 -> vector<4x128xf32>
    %44 = vector.broadcast %5 : vector<1x128xf32> to vector<4x128xf32>
    %45 = arith.mulf %43, %44 : vector<4x128xf32>
    %c121_i32 = arith.constant 121 : i32
    %46 = tpu.dynamic_rotate %30 by %c121_i32 dim 1 : vector<4x128xf32>, i32 -> vector<4x128xf32>
    %47 = vector.broadcast %6 : vector<1x128xf32> to vector<4x128xf32>
    %48 = arith.mulf %46, %47 : vector<4x128xf32>
    %c120_i32 = arith.constant 120 : i32
    %49 = tpu.dynamic_rotate %30 by %c120_i32 dim 1 : vector<4x128xf32>, i32 -> vector<4x128xf32>
    %50 = vector.broadcast %7 : vector<1x128xf32> to vector<4x128xf32>
    %51 = arith.mulf %49, %50 : vector<4x128xf32>
    %c119_i32 = arith.constant 119 : i32
    %52 = tpu.dynamic_rotate %30 by %c119_i32 dim 1 : vector<4x128xf32>, i32 -> vector<4x128xf32>
    %53 = vector.broadcast %8 : vector<1x128xf32> to vector<4x128xf32>
    %54 = arith.mulf %52, %53 : vector<4x128xf32>
    %55 = tpu.concatenate %33, %36, %39, %42, %30, %45, %48, %51, %54 in 0 : vector<4x128xf32>, vector<4x128xf32>, vector<4x128xf32>, vector<4x128xf32>, vector<4x128xf32>, vector<4x128xf32>, vector<4x128xf32>, vector<4x128xf32>, vector<4x128xf32> -> vector<36x128xf32>
    %c0_14 = arith.constant 0 : index
    %c0_15 = arith.constant 0 : index
    %56 = vector.load %arg6[%c0_14, %c0_15] : memref<4x36xf32, #tpu.memory_space<vmem>>, vector<4x36xf32>
    %cst_16 = arith.constant dense<0.000000e+00> : vector<4x128xf32>
    %57 = tpu.matmul %56, %55, %cst_16 {dimension_numbers = #tpu.dot_dimension_numbers<[1], [0], [0], [1], [0, 0, 1, 1], [], []>} : vector<4x36xf32>, vector<36x128xf32>, vector<4x128xf32> -> vector<4x128xf32>
    %c0_17 = arith.constant 0 : index
    %c0_18 = arith.constant 0 : index
    %58 = vector.load %arg7[%c0_17, %c0_18] : memref<4x1xf32, #tpu.memory_space<vmem>>, vector<4x1xf32>
    %c0_19 = arith.constant 0 : index
    %c0_20 = arith.constant 0 : index
    %59 = vector.load %arg8[%c0_19, %c0_20] : memref<4x1xf32, #tpu.memory_space<vmem>>, vector<4x1xf32>
    %cst_21 = arith.constant 0.000000e+00 : f32
    %60 = vector.broadcast %cst_21 : f32 to vector<4x128xf32>
    %cst_22 = arith.constant 0.000000e+00 : f32
    %61 = vector.broadcast %cst_22 : f32 to vector<4x128xf32>
    %62 = vector.broadcast %10 : vector<1x128xf32> to vector<4x128xf32>
    %63 = arith.mulf %57, %62 : vector<4x128xf32>
    %64 = vector.shape_cast %63 : vector<4x128xf32> to vector<1x4x128xf32>
    %cst_23 = arith.constant dense<0.000000e+00> : vector<1xf32>
    %65 = vector.multi_reduction <add>, %64, %cst_23 [1, 2] : vector<1x4x128xf32> to vector<1xf32>
    %66 = vector.shape_cast %65 : vector<1xf32> to vector<1x1x1xf32>
    %67 = vector.extract %66[0, 0, 0] : f32 from vector<1x1x1xf32>
    %cst_24 = arith.constant 3.906250e-03 : f32
    %68 = arith.mulf %67, %cst_24 : f32
    %69 = vector.broadcast %68 : f32 to vector<4x128xf32>
    %70 = arith.subf %57, %69 : vector<4x128xf32>
    %71 = vector.broadcast %10 : vector<1x128xf32> to vector<4x128xf32>
    %72 = arith.mulf %70, %71 : vector<4x128xf32>
    %73 = arith.mulf %72, %72 : vector<4x128xf32>
    %74 = vector.shape_cast %73 : vector<4x128xf32> to vector<1x4x128xf32>
    %cst_25 = arith.constant dense<0.000000e+00> : vector<1xf32>
    %75 = vector.multi_reduction <add>, %74, %cst_25 [1, 2] : vector<1x4x128xf32> to vector<1xf32>
    %76 = vector.shape_cast %75 : vector<1xf32> to vector<1x1x1xf32>
    %77 = vector.extract %76[0, 0, 0] : f32 from vector<1x1x1xf32>
    %cst_26 = arith.constant 3.906250e-03 : f32
    %78 = arith.mulf %77, %cst_26 : f32
    %cst_27 = arith.constant 9.99999974E-6 : f32
    %79 = arith.addf %78, %cst_27 : f32
    %80 = math.rsqrt %79 : f32
    %81 = vector.broadcast %80 : f32 to vector<4x1xf32>
    %82 = arith.mulf %58, %81 : vector<4x1xf32>
    %83 = vector.broadcast %68 : f32 to vector<4x1xf32>
    %84 = arith.mulf %83, %82 : vector<4x1xf32>
    %85 = arith.subf %59, %84 : vector<4x1xf32>
    %86 = vector.broadcast %10 : vector<1x128xf32> to vector<4x128xf32>
    %87 = vector.broadcast %82 : vector<4x1xf32> to vector<4x128xf32>
    %88 = arith.mulf %86, %87 : vector<4x128xf32>
    %89 = arith.addf %60, %88 : vector<4x128xf32>
    %90 = vector.broadcast %10 : vector<1x128xf32> to vector<4x128xf32>
    %91 = vector.broadcast %85 : vector<4x1xf32> to vector<4x128xf32>
    %92 = arith.mulf %90, %91 : vector<4x128xf32>
    %93 = arith.addf %61, %92 : vector<4x128xf32>
    %94 = vector.broadcast %11 : vector<1x128xf32> to vector<4x128xf32>
    %95 = arith.mulf %57, %94 : vector<4x128xf32>
    %96 = vector.shape_cast %95 : vector<4x128xf32> to vector<1x4x128xf32>
    %cst_28 = arith.constant dense<0.000000e+00> : vector<1xf32>
    %97 = vector.multi_reduction <add>, %96, %cst_28 [1, 2] : vector<1x4x128xf32> to vector<1xf32>
    %98 = vector.shape_cast %97 : vector<1xf32> to vector<1x1x1xf32>
    %99 = vector.extract %98[0, 0, 0] : f32 from vector<1x1x1xf32>
    %cst_29 = arith.constant 3.906250e-03 : f32
    %100 = arith.mulf %99, %cst_29 : f32
    %101 = vector.broadcast %100 : f32 to vector<4x128xf32>
    %102 = arith.subf %57, %101 : vector<4x128xf32>
    %103 = vector.broadcast %11 : vector<1x128xf32> to vector<4x128xf32>
    %104 = arith.mulf %102, %103 : vector<4x128xf32>
    %105 = arith.mulf %104, %104 : vector<4x128xf32>
    %106 = vector.shape_cast %105 : vector<4x128xf32> to vector<1x4x128xf32>
    %cst_30 = arith.constant dense<0.000000e+00> : vector<1xf32>
    %107 = vector.multi_reduction <add>, %106, %cst_30 [1, 2] : vector<1x4x128xf32> to vector<1xf32>
    %108 = vector.shape_cast %107 : vector<1xf32> to vector<1x1x1xf32>
    %109 = vector.extract %108[0, 0, 0] : f32 from vector<1x1x1xf32>
    %cst_31 = arith.constant 3.906250e-03 : f32
    %110 = arith.mulf %109, %cst_31 : f32
    %cst_32 = arith.constant 9.99999974E-6 : f32
    %111 = arith.addf %110, %cst_32 : f32
    %112 = math.rsqrt %111 : f32
    %113 = vector.broadcast %112 : f32 to vector<4x1xf32>
    %114 = arith.mulf %58, %113 : vector<4x1xf32>
    %115 = vector.broadcast %100 : f32 to vector<4x1xf32>
    %116 = arith.mulf %115, %114 : vector<4x1xf32>
    %117 = arith.subf %59, %116 : vector<4x1xf32>
    %118 = vector.broadcast %11 : vector<1x128xf32> to vector<4x128xf32>
    %119 = vector.broadcast %114 : vector<4x1xf32> to vector<4x128xf32>
    %120 = arith.mulf %118, %119 : vector<4x128xf32>
    %121 = arith.addf %89, %120 : vector<4x128xf32>
    %122 = vector.broadcast %11 : vector<1x128xf32> to vector<4x128xf32>
    %123 = vector.broadcast %117 : vector<4x1xf32> to vector<4x128xf32>
    %124 = arith.mulf %122, %123 : vector<4x128xf32>
    %125 = arith.addf %93, %124 : vector<4x128xf32>
    %126 = arith.mulf %57, %121 : vector<4x128xf32>
    %127 = arith.addf %126, %125 : vector<4x128xf32>
    %128 = arith.negf %127 : vector<4x128xf32>
    %129 = math.exp %128 : vector<4x128xf32>
    %cst_33 = arith.constant 1.000000e+00 : f32
    %130 = vector.broadcast %cst_33 : f32 to vector<4x128xf32>
    %131 = arith.addf %130, %129 : vector<4x128xf32>
    %132 = arith.divf %130, %131 : vector<4x128xf32>
    %133 = arith.mulf %127, %132 : vector<4x128xf32>
    %c9_i32_34 = arith.constant 9 : i32
    %134 = tpu.dynamic_rotate %133 by %c9_i32_34 dim 1 : vector<4x128xf32>, i32 -> vector<4x128xf32>
    %135 = vector.broadcast %1 : vector<1x128xf32> to vector<4x128xf32>
    %136 = arith.mulf %134, %135 : vector<4x128xf32>
    %c8_i32_35 = arith.constant 8 : i32
    %137 = tpu.dynamic_rotate %133 by %c8_i32_35 dim 1 : vector<4x128xf32>, i32 -> vector<4x128xf32>
    %138 = vector.broadcast %2 : vector<1x128xf32> to vector<4x128xf32>
    %139 = arith.mulf %137, %138 : vector<4x128xf32>
    %c7_i32_36 = arith.constant 7 : i32
    %140 = tpu.dynamic_rotate %133 by %c7_i32_36 dim 1 : vector<4x128xf32>, i32 -> vector<4x128xf32>
    %141 = vector.broadcast %3 : vector<1x128xf32> to vector<4x128xf32>
    %142 = arith.mulf %140, %141 : vector<4x128xf32>
    %c1_i32_37 = arith.constant 1 : i32
    %143 = tpu.dynamic_rotate %133 by %c1_i32_37 dim 1 : vector<4x128xf32>, i32 -> vector<4x128xf32>
    %144 = vector.broadcast %4 : vector<1x128xf32> to vector<4x128xf32>
    %145 = arith.mulf %143, %144 : vector<4x128xf32>
    %c127_i32_38 = arith.constant 127 : i32
    %146 = tpu.dynamic_rotate %133 by %c127_i32_38 dim 1 : vector<4x128xf32>, i32 -> vector<4x128xf32>
    %147 = vector.broadcast %5 : vector<1x128xf32> to vector<4x128xf32>
    %148 = arith.mulf %146, %147 : vector<4x128xf32>
    %c121_i32_39 = arith.constant 121 : i32
    %149 = tpu.dynamic_rotate %133 by %c121_i32_39 dim 1 : vector<4x128xf32>, i32 -> vector<4x128xf32>
    %150 = vector.broadcast %6 : vector<1x128xf32> to vector<4x128xf32>
    %151 = arith.mulf %149, %150 : vector<4x128xf32>
    %c120_i32_40 = arith.constant 120 : i32
    %152 = tpu.dynamic_rotate %133 by %c120_i32_40 dim 1 : vector<4x128xf32>, i32 -> vector<4x128xf32>
    %153 = vector.broadcast %7 : vector<1x128xf32> to vector<4x128xf32>
    %154 = arith.mulf %152, %153 : vector<4x128xf32>
    %c119_i32_41 = arith.constant 119 : i32
    %155 = tpu.dynamic_rotate %133 by %c119_i32_41 dim 1 : vector<4x128xf32>, i32 -> vector<4x128xf32>
    %156 = vector.broadcast %8 : vector<1x128xf32> to vector<4x128xf32>
    %157 = arith.mulf %155, %156 : vector<4x128xf32>
    %158 = tpu.concatenate %136, %139, %142, %145, %133, %148, %151, %154, %157 in 0 : vector<4x128xf32>, vector<4x128xf32>, vector<4x128xf32>, vector<4x128xf32>, vector<4x128xf32>, vector<4x128xf32>, vector<4x128xf32>, vector<4x128xf32>, vector<4x128xf32> -> vector<36x128xf32>
    %c0_42 = arith.constant 0 : index
    %c0_43 = arith.constant 0 : index
    %159 = vector.load %arg9[%c0_42, %c0_43] : memref<4x36xf32, #tpu.memory_space<vmem>>, vector<4x36xf32>
    %cst_44 = arith.constant dense<0.000000e+00> : vector<4x128xf32>
    %160 = tpu.matmul %159, %158, %cst_44 {dimension_numbers = #tpu.dot_dimension_numbers<[1], [0], [0], [1], [0, 0, 1, 1], [], []>} : vector<4x36xf32>, vector<36x128xf32>, vector<4x128xf32> -> vector<4x128xf32>
    %c0_45 = arith.constant 0 : index
    %c0_46 = arith.constant 0 : index
    %161 = vector.load %arg10[%c0_45, %c0_46] : memref<4x1xf32, #tpu.memory_space<vmem>>, vector<4x1xf32>
    %c0_47 = arith.constant 0 : index
    %c0_48 = arith.constant 0 : index
    %162 = vector.load %arg11[%c0_47, %c0_48] : memref<4x1xf32, #tpu.memory_space<vmem>>, vector<4x1xf32>
    %cst_49 = arith.constant 0.000000e+00 : f32
    %163 = vector.broadcast %cst_49 : f32 to vector<4x128xf32>
    %cst_50 = arith.constant 0.000000e+00 : f32
    %164 = vector.broadcast %cst_50 : f32 to vector<4x128xf32>
    %165 = vector.broadcast %10 : vector<1x128xf32> to vector<4x128xf32>
    %166 = arith.mulf %160, %165 : vector<4x128xf32>
    %167 = vector.shape_cast %166 : vector<4x128xf32> to vector<1x4x128xf32>
    %cst_51 = arith.constant dense<0.000000e+00> : vector<1xf32>
    %168 = vector.multi_reduction <add>, %167, %cst_51 [1, 2] : vector<1x4x128xf32> to vector<1xf32>
    %169 = vector.shape_cast %168 : vector<1xf32> to vector<1x1x1xf32>
    %170 = vector.extract %169[0, 0, 0] : f32 from vector<1x1x1xf32>
    %cst_52 = arith.constant 3.906250e-03 : f32
    %171 = arith.mulf %170, %cst_52 : f32
    %172 = vector.broadcast %171 : f32 to vector<4x128xf32>
    %173 = arith.subf %160, %172 : vector<4x128xf32>
    %174 = vector.broadcast %10 : vector<1x128xf32> to vector<4x128xf32>
    %175 = arith.mulf %173, %174 : vector<4x128xf32>
    %176 = arith.mulf %175, %175 : vector<4x128xf32>
    %177 = vector.shape_cast %176 : vector<4x128xf32> to vector<1x4x128xf32>
    %cst_53 = arith.constant dense<0.000000e+00> : vector<1xf32>
    %178 = vector.multi_reduction <add>, %177, %cst_53 [1, 2] : vector<1x4x128xf32> to vector<1xf32>
    %179 = vector.shape_cast %178 : vector<1xf32> to vector<1x1x1xf32>
    %180 = vector.extract %179[0, 0, 0] : f32 from vector<1x1x1xf32>
    %cst_54 = arith.constant 3.906250e-03 : f32
    %181 = arith.mulf %180, %cst_54 : f32
    %cst_55 = arith.constant 9.99999974E-6 : f32
    %182 = arith.addf %181, %cst_55 : f32
    %183 = math.rsqrt %182 : f32
    %184 = vector.broadcast %183 : f32 to vector<4x1xf32>
    %185 = arith.mulf %161, %184 : vector<4x1xf32>
    %186 = vector.broadcast %171 : f32 to vector<4x1xf32>
    %187 = arith.mulf %186, %185 : vector<4x1xf32>
    %188 = arith.subf %162, %187 : vector<4x1xf32>
    %189 = vector.broadcast %10 : vector<1x128xf32> to vector<4x128xf32>
    %190 = vector.broadcast %185 : vector<4x1xf32> to vector<4x128xf32>
    %191 = arith.mulf %189, %190 : vector<4x128xf32>
    %192 = arith.addf %163, %191 : vector<4x128xf32>
    %193 = vector.broadcast %10 : vector<1x128xf32> to vector<4x128xf32>
    %194 = vector.broadcast %188 : vector<4x1xf32> to vector<4x128xf32>
    %195 = arith.mulf %193, %194 : vector<4x128xf32>
    %196 = arith.addf %164, %195 : vector<4x128xf32>
    %197 = vector.broadcast %11 : vector<1x128xf32> to vector<4x128xf32>
    %198 = arith.mulf %160, %197 : vector<4x128xf32>
    %199 = vector.shape_cast %198 : vector<4x128xf32> to vector<1x4x128xf32>
    %cst_56 = arith.constant dense<0.000000e+00> : vector<1xf32>
    %200 = vector.multi_reduction <add>, %199, %cst_56 [1, 2] : vector<1x4x128xf32> to vector<1xf32>
    %201 = vector.shape_cast %200 : vector<1xf32> to vector<1x1x1xf32>
    %202 = vector.extract %201[0, 0, 0] : f32 from vector<1x1x1xf32>
    %cst_57 = arith.constant 3.906250e-03 : f32
    %203 = arith.mulf %202, %cst_57 : f32
    %204 = vector.broadcast %203 : f32 to vector<4x128xf32>
    %205 = arith.subf %160, %204 : vector<4x128xf32>
    %206 = vector.broadcast %11 : vector<1x128xf32> to vector<4x128xf32>
    %207 = arith.mulf %205, %206 : vector<4x128xf32>
    %208 = arith.mulf %207, %207 : vector<4x128xf32>
    %209 = vector.shape_cast %208 : vector<4x128xf32> to vector<1x4x128xf32>
    %cst_58 = arith.constant dense<0.000000e+00> : vector<1xf32>
    %210 = vector.multi_reduction <add>, %209, %cst_58 [1, 2] : vector<1x4x128xf32> to vector<1xf32>
    %211 = vector.shape_cast %210 : vector<1xf32> to vector<1x1x1xf32>
    %212 = vector.extract %211[0, 0, 0] : f32 from vector<1x1x1xf32>
    %cst_59 = arith.constant 3.906250e-03 : f32
    %213 = arith.mulf %212, %cst_59 : f32
    %cst_60 = arith.constant 9.99999974E-6 : f32
    %214 = arith.addf %213, %cst_60 : f32
    %215 = math.rsqrt %214 : f32
    %216 = vector.broadcast %215 : f32 to vector<4x1xf32>
    %217 = arith.mulf %161, %216 : vector<4x1xf32>
    %218 = vector.broadcast %203 : f32 to vector<4x1xf32>
    %219 = arith.mulf %218, %217 : vector<4x1xf32>
    %220 = arith.subf %162, %219 : vector<4x1xf32>
    %221 = vector.broadcast %11 : vector<1x128xf32> to vector<4x128xf32>
    %222 = vector.broadcast %217 : vector<4x1xf32> to vector<4x128xf32>
    %223 = arith.mulf %221, %222 : vector<4x128xf32>
    %224 = arith.addf %192, %223 : vector<4x128xf32>
    %225 = vector.broadcast %11 : vector<1x128xf32> to vector<4x128xf32>
    %226 = vector.broadcast %220 : vector<4x1xf32> to vector<4x128xf32>
    %227 = arith.mulf %225, %226 : vector<4x128xf32>
    %228 = arith.addf %196, %227 : vector<4x128xf32>
    %229 = arith.mulf %160, %224 : vector<4x128xf32>
    %230 = arith.addf %229, %228 : vector<4x128xf32>
    %231 = arith.addf %30, %230 : vector<4x128xf32>
    %232 = arith.negf %231 : vector<4x128xf32>
    %233 = math.exp %232 : vector<4x128xf32>
    %cst_61 = arith.constant 1.000000e+00 : f32
    %234 = vector.broadcast %cst_61 : f32 to vector<4x128xf32>
    %235 = arith.addf %234, %233 : vector<4x128xf32>
    %236 = arith.divf %234, %235 : vector<4x128xf32>
    %237 = arith.mulf %231, %236 : vector<4x128xf32>
    %c9_i32_62 = arith.constant 9 : i32
    %238 = tpu.dynamic_rotate %237 by %c9_i32_62 dim 1 : vector<4x128xf32>, i32 -> vector<4x128xf32>
    %239 = vector.broadcast %1 : vector<1x128xf32> to vector<4x128xf32>
    %240 = arith.mulf %238, %239 : vector<4x128xf32>
    %c8_i32_63 = arith.constant 8 : i32
    %241 = tpu.dynamic_rotate %237 by %c8_i32_63 dim 1 : vector<4x128xf32>, i32 -> vector<4x128xf32>
    %242 = vector.broadcast %2 : vector<1x128xf32> to vector<4x128xf32>
    %243 = arith.mulf %241, %242 : vector<4x128xf32>
    %c7_i32_64 = arith.constant 7 : i32
    %244 = tpu.dynamic_rotate %237 by %c7_i32_64 dim 1 : vector<4x128xf32>, i32 -> vector<4x128xf32>
    %245 = vector.broadcast %3 : vector<1x128xf32> to vector<4x128xf32>
    %246 = arith.mulf %244, %245 : vector<4x128xf32>
    %c1_i32_65 = arith.constant 1 : i32
    %247 = tpu.dynamic_rotate %237 by %c1_i32_65 dim 1 : vector<4x128xf32>, i32 -> vector<4x128xf32>
    %248 = vector.broadcast %4 : vector<1x128xf32> to vector<4x128xf32>
    %249 = arith.mulf %247, %248 : vector<4x128xf32>
    %c127_i32_66 = arith.constant 127 : i32
    %250 = tpu.dynamic_rotate %237 by %c127_i32_66 dim 1 : vector<4x128xf32>, i32 -> vector<4x128xf32>
    %251 = vector.broadcast %5 : vector<1x128xf32> to vector<4x128xf32>
    %252 = arith.mulf %250, %251 : vector<4x128xf32>
    %c121_i32_67 = arith.constant 121 : i32
    %253 = tpu.dynamic_rotate %237 by %c121_i32_67 dim 1 : vector<4x128xf32>, i32 -> vector<4x128xf32>
    %254 = vector.broadcast %6 : vector<1x128xf32> to vector<4x128xf32>
    %255 = arith.mulf %253, %254 : vector<4x128xf32>
    %c120_i32_68 = arith.constant 120 : i32
    %256 = tpu.dynamic_rotate %237 by %c120_i32_68 dim 1 : vector<4x128xf32>, i32 -> vector<4x128xf32>
    %257 = vector.broadcast %7 : vector<1x128xf32> to vector<4x128xf32>
    %258 = arith.mulf %256, %257 : vector<4x128xf32>
    %c119_i32_69 = arith.constant 119 : i32
    %259 = tpu.dynamic_rotate %237 by %c119_i32_69 dim 1 : vector<4x128xf32>, i32 -> vector<4x128xf32>
    %260 = vector.broadcast %8 : vector<1x128xf32> to vector<4x128xf32>
    %261 = arith.mulf %259, %260 : vector<4x128xf32>
    %262 = tpu.concatenate %240, %243, %246, %249, %237, %252, %255, %258, %261 in 0 : vector<4x128xf32>, vector<4x128xf32>, vector<4x128xf32>, vector<4x128xf32>, vector<4x128xf32>, vector<4x128xf32>, vector<4x128xf32>, vector<4x128xf32>, vector<4x128xf32> -> vector<36x128xf32>
    %c0_70 = arith.constant 0 : index
    %c0_71 = arith.constant 0 : index
    %263 = vector.load %arg12[%c0_70, %c0_71] : memref<8x36xf32, #tpu.memory_space<vmem>>, vector<8x36xf32>
    %cst_72 = arith.constant dense<0.000000e+00> : vector<8x128xf32>
    %264 = tpu.matmul %263, %262, %cst_72 {dimension_numbers = #tpu.dot_dimension_numbers<[1], [0], [0], [1], [0, 0, 1, 1], [], []>} : vector<8x36xf32>, vector<36x128xf32>, vector<8x128xf32> -> vector<8x128xf32>
    %c0_73 = arith.constant 0 : index
    %c0_74 = arith.constant 0 : index
    %265 = vector.load %arg13[%c0_73, %c0_74] : memref<8x1xf32, #tpu.memory_space<vmem>>, vector<8x1xf32>
    %c0_75 = arith.constant 0 : index
    %c0_76 = arith.constant 0 : index
    %266 = vector.load %arg14[%c0_75, %c0_76] : memref<8x1xf32, #tpu.memory_space<vmem>>, vector<8x1xf32>
    %cst_77 = arith.constant 0.000000e+00 : f32
    %267 = vector.broadcast %cst_77 : f32 to vector<8x128xf32>
    %cst_78 = arith.constant 0.000000e+00 : f32
    %268 = vector.broadcast %cst_78 : f32 to vector<8x128xf32>
    %269 = vector.broadcast %10 : vector<1x128xf32> to vector<8x128xf32>
    %270 = arith.mulf %264, %269 : vector<8x128xf32>
    %271 = vector.shape_cast %270 : vector<8x128xf32> to vector<1x8x128xf32>
    %cst_79 = arith.constant dense<0.000000e+00> : vector<1xf32>
    %272 = vector.multi_reduction <add>, %271, %cst_79 [1, 2] : vector<1x8x128xf32> to vector<1xf32>
    %273 = vector.shape_cast %272 : vector<1xf32> to vector<1x1x1xf32>
    %274 = vector.extract %273[0, 0, 0] : f32 from vector<1x1x1xf32>
    %cst_80 = arith.constant 0.001953125 : f32
    %275 = arith.mulf %274, %cst_80 : f32
    %276 = vector.broadcast %275 : f32 to vector<8x128xf32>
    %277 = arith.subf %264, %276 : vector<8x128xf32>
    %278 = vector.broadcast %10 : vector<1x128xf32> to vector<8x128xf32>
    %279 = arith.mulf %277, %278 : vector<8x128xf32>
    %280 = arith.mulf %279, %279 : vector<8x128xf32>
    %281 = vector.shape_cast %280 : vector<8x128xf32> to vector<1x8x128xf32>
    %cst_81 = arith.constant dense<0.000000e+00> : vector<1xf32>
    %282 = vector.multi_reduction <add>, %281, %cst_81 [1, 2] : vector<1x8x128xf32> to vector<1xf32>
    %283 = vector.shape_cast %282 : vector<1xf32> to vector<1x1x1xf32>
    %284 = vector.extract %283[0, 0, 0] : f32 from vector<1x1x1xf32>
    %cst_82 = arith.constant 0.001953125 : f32
    %285 = arith.mulf %284, %cst_82 : f32
    %cst_83 = arith.constant 9.99999974E-6 : f32
    %286 = arith.addf %285, %cst_83 : f32
    %287 = math.rsqrt %286 : f32
    %288 = vector.broadcast %287 : f32 to vector<8x1xf32>
    %289 = arith.mulf %265, %288 : vector<8x1xf32>
    %290 = vector.broadcast %275 : f32 to vector<8x1xf32>
    %291 = arith.mulf %290, %289 : vector<8x1xf32>
    %292 = arith.subf %266, %291 : vector<8x1xf32>
    %293 = vector.broadcast %10 : vector<1x128xf32> to vector<8x128xf32>
    %294 = vector.broadcast %289 : vector<8x1xf32> to vector<8x128xf32>
    %295 = arith.mulf %293, %294 : vector<8x128xf32>
    %296 = arith.addf %267, %295 : vector<8x128xf32>
    %297 = vector.broadcast %10 : vector<1x128xf32> to vector<8x128xf32>
    %298 = vector.broadcast %292 : vector<8x1xf32> to vector<8x128xf32>
    %299 = arith.mulf %297, %298 : vector<8x128xf32>
    %300 = arith.addf %268, %299 : vector<8x128xf32>
    %301 = vector.broadcast %11 : vector<1x128xf32> to vector<8x128xf32>
    %302 = arith.mulf %264, %301 : vector<8x128xf32>
    %303 = vector.shape_cast %302 : vector<8x128xf32> to vector<1x8x128xf32>
    %cst_84 = arith.constant dense<0.000000e+00> : vector<1xf32>
    %304 = vector.multi_reduction <add>, %303, %cst_84 [1, 2] : vector<1x8x128xf32> to vector<1xf32>
    %305 = vector.shape_cast %304 : vector<1xf32> to vector<1x1x1xf32>
    %306 = vector.extract %305[0, 0, 0] : f32 from vector<1x1x1xf32>
    %cst_85 = arith.constant 0.001953125 : f32
    %307 = arith.mulf %306, %cst_85 : f32
    %308 = vector.broadcast %307 : f32 to vector<8x128xf32>
    %309 = arith.subf %264, %308 : vector<8x128xf32>
    %310 = vector.broadcast %11 : vector<1x128xf32> to vector<8x128xf32>
    %311 = arith.mulf %309, %310 : vector<8x128xf32>
    %312 = arith.mulf %311, %311 : vector<8x128xf32>
    %313 = vector.shape_cast %312 : vector<8x128xf32> to vector<1x8x128xf32>
    %cst_86 = arith.constant dense<0.000000e+00> : vector<1xf32>
    %314 = vector.multi_reduction <add>, %313, %cst_86 [1, 2] : vector<1x8x128xf32> to vector<1xf32>
    %315 = vector.shape_cast %314 : vector<1xf32> to vector<1x1x1xf32>
    %316 = vector.extract %315[0, 0, 0] : f32 from vector<1x1x1xf32>
    %cst_87 = arith.constant 0.001953125 : f32
    %317 = arith.mulf %316, %cst_87 : f32
    %cst_88 = arith.constant 9.99999974E-6 : f32
    %318 = arith.addf %317, %cst_88 : f32
    %319 = math.rsqrt %318 : f32
    %320 = vector.broadcast %319 : f32 to vector<8x1xf32>
    %321 = arith.mulf %265, %320 : vector<8x1xf32>
    %322 = vector.broadcast %307 : f32 to vector<8x1xf32>
    %323 = arith.mulf %322, %321 : vector<8x1xf32>
    %324 = arith.subf %266, %323 : vector<8x1xf32>
    %325 = vector.broadcast %11 : vector<1x128xf32> to vector<8x128xf32>
    %326 = vector.broadcast %321 : vector<8x1xf32> to vector<8x128xf32>
    %327 = arith.mulf %325, %326 : vector<8x128xf32>
    %328 = arith.addf %296, %327 : vector<8x128xf32>
    %329 = vector.broadcast %11 : vector<1x128xf32> to vector<8x128xf32>
    %330 = vector.broadcast %324 : vector<8x1xf32> to vector<8x128xf32>
    %331 = arith.mulf %329, %330 : vector<8x128xf32>
    %332 = arith.addf %300, %331 : vector<8x128xf32>
    %333 = arith.mulf %264, %328 : vector<8x128xf32>
    %334 = arith.addf %333, %332 : vector<8x128xf32>
    %335 = arith.negf %334 : vector<8x128xf32>
    %336 = math.exp %335 : vector<8x128xf32>
    %cst_89 = arith.constant 1.000000e+00 : f32
    %337 = vector.broadcast %cst_89 : f32 to vector<8x128xf32>
    %338 = arith.addf %337, %336 : vector<8x128xf32>
    %339 = arith.divf %337, %338 : vector<8x128xf32>
    %340 = arith.mulf %334, %339 : vector<8x128xf32>
    %c9_i32_90 = arith.constant 9 : i32
    %341 = tpu.dynamic_rotate %340 by %c9_i32_90 dim 1 : vector<8x128xf32>, i32 -> vector<8x128xf32>
    %342 = vector.broadcast %1 : vector<1x128xf32> to vector<8x128xf32>
    %343 = arith.mulf %341, %342 : vector<8x128xf32>
    %c8_i32_91 = arith.constant 8 : i32
    %344 = tpu.dynamic_rotate %340 by %c8_i32_91 dim 1 : vector<8x128xf32>, i32 -> vector<8x128xf32>
    %345 = vector.broadcast %2 : vector<1x128xf32> to vector<8x128xf32>
    %346 = arith.mulf %344, %345 : vector<8x128xf32>
    %c7_i32_92 = arith.constant 7 : i32
    %347 = tpu.dynamic_rotate %340 by %c7_i32_92 dim 1 : vector<8x128xf32>, i32 -> vector<8x128xf32>
    %348 = vector.broadcast %3 : vector<1x128xf32> to vector<8x128xf32>
    %349 = arith.mulf %347, %348 : vector<8x128xf32>
    %c1_i32_93 = arith.constant 1 : i32
    %350 = tpu.dynamic_rotate %340 by %c1_i32_93 dim 1 : vector<8x128xf32>, i32 -> vector<8x128xf32>
    %351 = vector.broadcast %4 : vector<1x128xf32> to vector<8x128xf32>
    %352 = arith.mulf %350, %351 : vector<8x128xf32>
    %c127_i32_94 = arith.constant 127 : i32
    %353 = tpu.dynamic_rotate %340 by %c127_i32_94 dim 1 : vector<8x128xf32>, i32 -> vector<8x128xf32>
    %354 = vector.broadcast %5 : vector<1x128xf32> to vector<8x128xf32>
    %355 = arith.mulf %353, %354 : vector<8x128xf32>
    %c121_i32_95 = arith.constant 121 : i32
    %356 = tpu.dynamic_rotate %340 by %c121_i32_95 dim 1 : vector<8x128xf32>, i32 -> vector<8x128xf32>
    %357 = vector.broadcast %6 : vector<1x128xf32> to vector<8x128xf32>
    %358 = arith.mulf %356, %357 : vector<8x128xf32>
    %c120_i32_96 = arith.constant 120 : i32
    %359 = tpu.dynamic_rotate %340 by %c120_i32_96 dim 1 : vector<8x128xf32>, i32 -> vector<8x128xf32>
    %360 = vector.broadcast %7 : vector<1x128xf32> to vector<8x128xf32>
    %361 = arith.mulf %359, %360 : vector<8x128xf32>
    %c119_i32_97 = arith.constant 119 : i32
    %362 = tpu.dynamic_rotate %340 by %c119_i32_97 dim 1 : vector<8x128xf32>, i32 -> vector<8x128xf32>
    %363 = vector.broadcast %8 : vector<1x128xf32> to vector<8x128xf32>
    %364 = arith.mulf %362, %363 : vector<8x128xf32>
    %365 = tpu.concatenate %343, %346, %349, %352, %340, %355, %358, %361, %364 in 0 : vector<8x128xf32>, vector<8x128xf32>, vector<8x128xf32>, vector<8x128xf32>, vector<8x128xf32>, vector<8x128xf32>, vector<8x128xf32>, vector<8x128xf32>, vector<8x128xf32> -> vector<72x128xf32>
    %c0_98 = arith.constant 0 : index
    %c0_99 = arith.constant 0 : index
    %366 = vector.load %arg15[%c0_98, %c0_99] : memref<8x72xf32, #tpu.memory_space<vmem>>, vector<8x72xf32>
    %cst_100 = arith.constant dense<0.000000e+00> : vector<8x128xf32>
    %367 = tpu.matmul %366, %365, %cst_100 {dimension_numbers = #tpu.dot_dimension_numbers<[1], [0], [0], [1], [0, 0, 1, 1], [], []>} : vector<8x72xf32>, vector<72x128xf32>, vector<8x128xf32> -> vector<8x128xf32>
    %c0_101 = arith.constant 0 : index
    %c0_102 = arith.constant 0 : index
    %368 = vector.load %arg16[%c0_101, %c0_102] : memref<8x1xf32, #tpu.memory_space<vmem>>, vector<8x1xf32>
    %c0_103 = arith.constant 0 : index
    %c0_104 = arith.constant 0 : index
    %369 = vector.load %arg17[%c0_103, %c0_104] : memref<8x1xf32, #tpu.memory_space<vmem>>, vector<8x1xf32>
    %cst_105 = arith.constant 0.000000e+00 : f32
    %370 = vector.broadcast %cst_105 : f32 to vector<8x128xf32>
    %cst_106 = arith.constant 0.000000e+00 : f32
    %371 = vector.broadcast %cst_106 : f32 to vector<8x128xf32>
    %372 = vector.broadcast %10 : vector<1x128xf32> to vector<8x128xf32>
    %373 = arith.mulf %367, %372 : vector<8x128xf32>
    %374 = vector.shape_cast %373 : vector<8x128xf32> to vector<1x8x128xf32>
    %cst_107 = arith.constant dense<0.000000e+00> : vector<1xf32>
    %375 = vector.multi_reduction <add>, %374, %cst_107 [1, 2] : vector<1x8x128xf32> to vector<1xf32>
    %376 = vector.shape_cast %375 : vector<1xf32> to vector<1x1x1xf32>
    %377 = vector.extract %376[0, 0, 0] : f32 from vector<1x1x1xf32>
    %cst_108 = arith.constant 0.001953125 : f32
    %378 = arith.mulf %377, %cst_108 : f32
    %379 = vector.broadcast %378 : f32 to vector<8x128xf32>
    %380 = arith.subf %367, %379 : vector<8x128xf32>
    %381 = vector.broadcast %10 : vector<1x128xf32> to vector<8x128xf32>
    %382 = arith.mulf %380, %381 : vector<8x128xf32>
    %383 = arith.mulf %382, %382 : vector<8x128xf32>
    %384 = vector.shape_cast %383 : vector<8x128xf32> to vector<1x8x128xf32>
    %cst_109 = arith.constant dense<0.000000e+00> : vector<1xf32>
    %385 = vector.multi_reduction <add>, %384, %cst_109 [1, 2] : vector<1x8x128xf32> to vector<1xf32>
    %386 = vector.shape_cast %385 : vector<1xf32> to vector<1x1x1xf32>
    %387 = vector.extract %386[0, 0, 0] : f32 from vector<1x1x1xf32>
    %cst_110 = arith.constant 0.001953125 : f32
    %388 = arith.mulf %387, %cst_110 : f32
    %cst_111 = arith.constant 9.99999974E-6 : f32
    %389 = arith.addf %388, %cst_111 : f32
    %390 = math.rsqrt %389 : f32
    %391 = vector.broadcast %390 : f32 to vector<8x1xf32>
    %392 = arith.mulf %368, %391 : vector<8x1xf32>
    %393 = vector.broadcast %378 : f32 to vector<8x1xf32>
    %394 = arith.mulf %393, %392 : vector<8x1xf32>
    %395 = arith.subf %369, %394 : vector<8x1xf32>
    %396 = arith.addf %395, %13 : vector<8x1xf32>
    %397 = vector.broadcast %10 : vector<1x128xf32> to vector<8x128xf32>
    %398 = vector.broadcast %392 : vector<8x1xf32> to vector<8x128xf32>
    %399 = arith.mulf %397, %398 : vector<8x128xf32>
    %400 = arith.addf %370, %399 : vector<8x128xf32>
    %401 = vector.broadcast %10 : vector<1x128xf32> to vector<8x128xf32>
    %402 = vector.broadcast %396 : vector<8x1xf32> to vector<8x128xf32>
    %403 = arith.mulf %401, %402 : vector<8x128xf32>
    %404 = arith.addf %371, %403 : vector<8x128xf32>
    %405 = vector.broadcast %11 : vector<1x128xf32> to vector<8x128xf32>
    %406 = arith.mulf %367, %405 : vector<8x128xf32>
    %407 = vector.shape_cast %406 : vector<8x128xf32> to vector<1x8x128xf32>
    %cst_112 = arith.constant dense<0.000000e+00> : vector<1xf32>
    %408 = vector.multi_reduction <add>, %407, %cst_112 [1, 2] : vector<1x8x128xf32> to vector<1xf32>
    %409 = vector.shape_cast %408 : vector<1xf32> to vector<1x1x1xf32>
    %410 = vector.extract %409[0, 0, 0] : f32 from vector<1x1x1xf32>
    %cst_113 = arith.constant 0.001953125 : f32
    %411 = arith.mulf %410, %cst_113 : f32
    %412 = vector.broadcast %411 : f32 to vector<8x128xf32>
    %413 = arith.subf %367, %412 : vector<8x128xf32>
    %414 = vector.broadcast %11 : vector<1x128xf32> to vector<8x128xf32>
    %415 = arith.mulf %413, %414 : vector<8x128xf32>
    %416 = arith.mulf %415, %415 : vector<8x128xf32>
    %417 = vector.shape_cast %416 : vector<8x128xf32> to vector<1x8x128xf32>
    %cst_114 = arith.constant dense<0.000000e+00> : vector<1xf32>
    %418 = vector.multi_reduction <add>, %417, %cst_114 [1, 2] : vector<1x8x128xf32> to vector<1xf32>
    %419 = vector.shape_cast %418 : vector<1xf32> to vector<1x1x1xf32>
    %420 = vector.extract %419[0, 0, 0] : f32 from vector<1x1x1xf32>
    %cst_115 = arith.constant 0.001953125 : f32
    %421 = arith.mulf %420, %cst_115 : f32
    %cst_116 = arith.constant 9.99999974E-6 : f32
    %422 = arith.addf %421, %cst_116 : f32
    %423 = math.rsqrt %422 : f32
    %424 = vector.broadcast %423 : f32 to vector<8x1xf32>
    %425 = arith.mulf %368, %424 : vector<8x1xf32>
    %426 = vector.broadcast %411 : f32 to vector<8x1xf32>
    %427 = arith.mulf %426, %425 : vector<8x1xf32>
    %428 = arith.subf %369, %427 : vector<8x1xf32>
    %429 = arith.addf %428, %14 : vector<8x1xf32>
    %430 = vector.broadcast %11 : vector<1x128xf32> to vector<8x128xf32>
    %431 = vector.broadcast %425 : vector<8x1xf32> to vector<8x128xf32>
    %432 = arith.mulf %430, %431 : vector<8x128xf32>
    %433 = arith.addf %400, %432 : vector<8x128xf32>
    %434 = vector.broadcast %11 : vector<1x128xf32> to vector<8x128xf32>
    %435 = vector.broadcast %429 : vector<8x1xf32> to vector<8x128xf32>
    %436 = arith.mulf %434, %435 : vector<8x128xf32>
    %437 = arith.addf %404, %436 : vector<8x128xf32>
    %438 = arith.mulf %367, %433 : vector<8x128xf32>
    %439 = arith.addf %438, %437 : vector<8x128xf32>
    %c0_117 = arith.constant 0 : index
    %c0_118 = arith.constant 0 : index
    %440 = vector.load %arg18[%c0_117, %c0_118] : memref<8x128xf32, #tpu.memory_space<vmem>>, vector<8x128xf32>
    tpu.vector_store %arg18[%c0_117, %c0_118], %439 {strides = array<i32>} : memref<8x128xf32, #tpu.memory_space<vmem>>, vector<8x128xf32>,
    return
  }
  func.func @transform_0(%arg0: i32) -> (i32, i32, i32) {
    %c0_i32 = arith.constant 0 : i32
    %c0_i32_0 = arith.constant 0 : i32
    %c0_i32_1 = arith.constant 0 : i32
    return %arg0, %c0_i32, %c0_i32_0 : i32, i32, i32
  }
  func.func @transform_1(%arg0: i32) -> (i32, i32) {
    %c0_i32 = arith.constant 0 : i32
    %c0_i32_0 = arith.constant 0 : i32
    return %c0_i32, %arg0 : i32, i32
  }
  func.func @transform_2(%arg0: i32) -> (i32, i32) {
    %c0_i32 = arith.constant 0 : i32
    %c0_i32_0 = arith.constant 0 : i32
    %c0_i32_1 = arith.constant 0 : i32
    return %c0_i32, %c0_i32_0 : i32, i32
  }
  func.func @transform_3(%arg0: i32) -> (i32, i32) {
    %c0_i32 = arith.constant 0 : i32
    %c0_i32_0 = arith.constant 0 : i32
    %c0_i32_1 = arith.constant 0 : i32
    return %c0_i32, %c0_i32_0 : i32, i32
  }
  func.func @transform_4(%arg0: i32) -> (i32, i32, i32) {
    %c0_i32 = arith.constant 0 : i32
    %c0_i32_0 = arith.constant 0 : i32
    %c0_i32_1 = arith.constant 0 : i32
    %c0_i32_2 = arith.constant 0 : i32
    return %c0_i32, %c0_i32_0, %c0_i32_1 : i32, i32, i32
  }
  func.func @transform_5(%arg0: i32) -> (i32, i32) {
    %c0_i32 = arith.constant 0 : i32
    %c0_i32_0 = arith.constant 0 : i32
    %c0_i32_1 = arith.constant 0 : i32
    return %c0_i32, %c0_i32_0 : i32, i32
  }
  func.func @transform_6(%arg0: i32) -> (i32, i32) {
    %c0_i32 = arith.constant 0 : i32
    %c0_i32_0 = arith.constant 0 : i32
    %c0_i32_1 = arith.constant 0 : i32
    return %c0_i32, %c0_i32_0 : i32, i32
  }
  func.func @transform_7(%arg0: i32) -> (i32, i32) {
    %c0_i32 = arith.constant 0 : i32
    %c0_i32_0 = arith.constant 0 : i32
    %c0_i32_1 = arith.constant 0 : i32
    return %c0_i32, %c0_i32_0 : i32, i32
  }
  func.func @transform_8(%arg0: i32) -> (i32, i32) {
    %c0_i32 = arith.constant 0 : i32
    %c0_i32_0 = arith.constant 0 : i32
    %c0_i32_1 = arith.constant 0 : i32
    return %c0_i32, %c0_i32_0 : i32, i32
  }
  func.func @transform_9(%arg0: i32) -> (i32, i32) {
    %c0_i32 = arith.constant 0 : i32
    %c0_i32_0 = arith.constant 0 : i32
    %c0_i32_1 = arith.constant 0 : i32
    return %c0_i32, %c0_i32_0 : i32, i32
  }
  func.func @transform_10(%arg0: i32) -> (i32, i32) {
    %c0_i32 = arith.constant 0 : i32
    %c0_i32_0 = arith.constant 0 : i32
    %c0_i32_1 = arith.constant 0 : i32
    return %c0_i32, %c0_i32_0 : i32, i32
  }
  func.func @transform_11(%arg0: i32) -> (i32, i32) {
    %c0_i32 = arith.constant 0 : i32
    %c0_i32_0 = arith.constant 0 : i32
    %c0_i32_1 = arith.constant 0 : i32
    return %c0_i32, %c0_i32_0 : i32, i32
  }
  func.func @transform_12(%arg0: i32) -> (i32, i32) {
    %c0_i32 = arith.constant 0 : i32
    %c0_i32_0 = arith.constant 0 : i32
    %c0_i32_1 = arith.constant 0 : i32
    return %c0_i32, %c0_i32_0 : i32, i32
  }
  func.func @transform_13(%arg0: i32) -> (i32, i32) {
    %c0_i32 = arith.constant 0 : i32
    %c0_i32_0 = arith.constant 0 : i32
    %c0_i32_1 = arith.constant 0 : i32
    return %c0_i32, %c0_i32_0 : i32, i32
  }
  func.func @transform_14(%arg0: i32) -> (i32, i32) {
    %c0_i32 = arith.constant 0 : i32
    %c0_i32_0 = arith.constant 0 : i32
    %c0_i32_1 = arith.constant 0 : i32
    return %c0_i32, %c0_i32_0 : i32, i32
  }
  func.func @transform_15(%arg0: i32) -> (i32, i32) {
    %c0_i32 = arith.constant 0 : i32
    %c0_i32_0 = arith.constant 0 : i32
    %c0_i32_1 = arith.constant 0 : i32
    return %c0_i32, %c0_i32_0 : i32, i32
  }
  func.func @transform_16(%arg0: i32) -> (i32, i32) {
    %c0_i32 = arith.constant 0 : i32
    %c0_i32_0 = arith.constant 0 : i32
    %c0_i32_1 = arith.constant 0 : i32
    return %c0_i32, %c0_i32_0 : i32, i32
  }
  func.func @transform_17(%arg0: i32) -> (i32, i32) {
    %c0_i32 = arith.constant 0 : i32
    %c0_i32_0 = arith.constant 0 : i32
    return %c0_i32, %arg0 : i32, i32
  }
}

</mosaic_0001>

<llo_original>
// kernel: down_block_forward.1
$region0: #{down_block_forward.1}
  #allocation0 [shape = 'u32[]', space=smem, size = 0x4, offset = 0x4, fixed_abs, tag = 'smem constant byte address 0x4 - core index']
  #allocation1 [shape = 'u32[72,128]{1,0:T(1,128)}', space=vmem, size = 0x9000, scoped, tag = 'internal scratch']
  %s0 = inlined_call_operand.vmem [shape: f32[2,4,256], index: 0, kind: input, shape index: {}]
  %s1 = inlined_call_operand.vmem [shape: f32[8,128], index: 1, kind: input, shape index: {}]
  %s2 = inlined_call_operand.vmem [shape: f32[9,128], index: 2, kind: input, shape index: {}]
  %s3 = inlined_call_operand.vmem [shape: f32[2,128], index: 3, kind: input, shape index: {}]
  %s4 = inlined_call_operand.hbm [shape: f32[2,256,128], index: 4, kind: input, shape index: {}]
  %s5 = inlined_call_operand.vmem [shape: f32[4,36], index: 5, kind: input, shape index: {}]
  %s6 = inlined_call_operand.vmem [shape: f32[4,1], index: 6, kind: input, shape index: {}]
  %s7 = inlined_call_operand.vmem [shape: f32[4,1], index: 7, kind: input, shape index: {}]
  %s8 = inlined_call_operand.vmem [shape: f32[4,36], index: 8, kind: input, shape index: {}]
  %s9 = inlined_call_operand.vmem [shape: f32[4,1], index: 9, kind: input, shape index: {}]
  %s10 = inlined_call_operand.vmem [shape: f32[4,1], index: 10, kind: input, shape index: {}]
  %s11 = inlined_call_operand.vmem [shape: f32[8,36], index: 11, kind: input, shape index: {}]
  %s12 = inlined_call_operand.vmem [shape: f32[8,1], index: 12, kind: input, shape index: {}]
  %s13 = inlined_call_operand.vmem [shape: f32[8,1], index: 13, kind: input, shape index: {}]
  %s14 = inlined_call_operand.vmem [shape: f32[8,72], index: 14, kind: input, shape index: {}]
  %s15 = inlined_call_operand.vmem [shape: f32[8,1], index: 15, kind: input, shape index: {}]
  %s16 = inlined_call_operand.vmem [shape: f32[8,1], index: 16, kind: input, shape index: {}]
  %s17 = inlined_call_operand.vmem [shape: f32[8,128], index: 17, kind: output, shape index: {}]
  %s18 = sld [smem:[#allocation0]]
  $region82: #{down_block_forward.1} parent=0
    _
  %s20 = ssub.s32 1, %s18
  %s21 = scalar_select 0, %s20, %s18
  $region1: #{down_block_forward.1} parent=0
    #allocation2 [shape = 'u8[262144]{0}', space=vmem, size = 0x40000, scoped, tag = 'input window, operand 4, single buffered']
    #allocation3 [shape = 's32[1]{0}', space=sflag, size = 0x4, scoped, tag = 'scoped memory for down_block_forward.1']
    %22 = vsyncpa [#allocation3], 0
    // Predicated region
    $region2: #{down_block_forward.1} parent=1 // pred_check
      _
    $region3: #{down_block_forward.1} parent=1 // pred_check_branch
      %24 = sbr.rel (0) target = $region5
    $region4: #{down_block_forward.1} parent=1 // pred_region
      _
    $region5: #{down_block_forward.1} parent=1 // pred_fallthru
      _
    // Predicated region
    $region6: #{down_block_forward.1} parent=1 // pred_check
      _
    $region7: #{down_block_forward.1} parent=1 // pred_check_branch
      %26 = sbr.rel (0) target = $region9
    $region8: #{down_block_forward.1} parent=1 // pred_region
      _
    $region9: #{down_block_forward.1} parent=1 // pred_fallthru
      _
    // Predicated region
    $region10: #{down_block_forward.1} parent=1 // pred_check
      _
    $region11: #{down_block_forward.1} parent=1 // pred_check_branch
      %28 = sbr.rel (0) target = $region13
    $region12: #{down_block_forward.1} parent=1 // pred_region
      _
    $region13: #{down_block_forward.1} parent=1 // pred_fallthru
      _
    // Predicated region
    $region14: #{down_block_forward.1} parent=1 // pred_check
      _
    $region15: #{down_block_forward.1} parent=1 // pred_check_branch
      %30 = sbr.rel (0) target = $region17
    $region16: #{down_block_forward.1} parent=1 // pred_region
      _
    $region17: #{down_block_forward.1} parent=1 // pred_fallthru
      _
    // Predicated region
    $region18: #{down_block_forward.1} parent=1 // pred_check
      _
    $region19: #{down_block_forward.1} parent=1 // pred_check_branch
      %32 = sbr.rel (0) target = $region21
    $region20: #{down_block_forward.1} parent=1 // pred_region
      %34 = vsyncadd [#allocation3], 0
      %s35 = sshll.u32 %s4, 4
      %s36 = int_to_ptr.hbm [resolvable:$true] %s35
      %s37 = sshll.u32 [#allocation2], 4
      %s38 = int_to_ptr.vmem [resolvable:$true] %s37
      %43 = dma.hbm_to_vmem [thread:$0]  %s36, 8192, %s38, [#allocation3], 128, 128, 8
    $region21: #{down_block_forward.1} parent=1 // pred_fallthru
      _
    // Predicated region
    $region22: #{down_block_forward.1} parent=1 // pred_check
      _
    $region23: #{down_block_forward.1} parent=1 // pred_check_branch
      %45 = sbr.rel (0) target = $region25
    $region24: #{down_block_forward.1} parent=1 // pred_region
      _
    $region25: #{down_block_forward.1} parent=1 // pred_fallthru
      _
    // Predicated region
    $region26: #{down_block_forward.1} parent=1 // pred_check
      _
    $region27: #{down_block_forward.1} parent=1 // pred_check_branch
      %47 = sbr.rel (0) target = $region29
    $region28: #{down_block_forward.1} parent=1 // pred_region
      _
    $region29: #{down_block_forward.1} parent=1 // pred_fallthru
      _
    // Predicated region
    $region30: #{down_block_forward.1} parent=1 // pred_check
      _
    $region31: #{down_block_forward.1} parent=1 // pred_check_branch
      %49 = sbr.rel (0) target = $region33
    $region32: #{down_block_forward.1} parent=1 // pred_region
      _
    $region33: #{down_block_forward.1} parent=1 // pred_fallthru
      _
    // Predicated region
    $region34: #{down_block_forward.1} parent=1 // pred_check
      _
    $region35: #{down_block_forward.1} parent=1 // pred_check_branch
      %51 = sbr.rel (0) target = $region37
    $region36: #{down_block_forward.1} parent=1 // pred_region
      _
    $region37: #{down_block_forward.1} parent=1 // pred_fallthru
      _
    // Predicated region
    $region38: #{down_block_forward.1} parent=1 // pred_check
      _
    $region39: #{down_block_forward.1} parent=1 // pred_check_branch
      %53 = sbr.rel (0) target = $region41
    $region40: #{down_block_forward.1} parent=1 // pred_region
      _
    $region41: #{down_block_forward.1} parent=1 // pred_fallthru
      _
    // Predicated region
    $region42: #{down_block_forward.1} parent=1 // pred_check
      _
    $region43: #{down_block_forward.1} parent=1 // pred_check_branch
      %55 = sbr.rel (0) target = $region45
    $region44: #{down_block_forward.1} parent=1 // pred_region
      _
    $region45: #{down_block_forward.1} parent=1 // pred_fallthru
      _
    // Predicated region
    $region46: #{down_block_forward.1} parent=1 // pred_check
      _
    $region47: #{down_block_forward.1} parent=1 // pred_check_branch
      %57 = sbr.rel (0) target = $region49
    $region48: #{down_block_forward.1} parent=1 // pred_region
      _
    $region49: #{down_block_forward.1} parent=1 // pred_fallthru
      _
    // Predicated region
    $region50: #{down_block_forward.1} parent=1 // pred_check
      _
    $region51: #{down_block_forward.1} parent=1 // pred_check_branch
      %59 = sbr.rel (0) target = $region53
    $region52: #{down_block_forward.1} parent=1 // pred_region
      _
    $region53: #{down_block_forward.1} parent=1 // pred_fallthru
      _
    // Predicated region
    $region54: #{down_block_forward.1} parent=1 // pred_check
      _
    $region55: #{down_block_forward.1} parent=1 // pred_check_branch
      %61 = sbr.rel (0) target = $region57
    $region56: #{down_block_forward.1} parent=1 // pred_region
      _
    $region57: #{down_block_forward.1} parent=1 // pred_fallthru
      _
    // Predicated region
    $region58: #{down_block_forward.1} parent=1 // pred_check
      _
    $region59: #{down_block_forward.1} parent=1 // pred_check_branch
      %63 = sbr.rel (0) target = $region61
    $region60: #{down_block_forward.1} parent=1 // pred_region
      _
    $region61: #{down_block_forward.1} parent=1 // pred_fallthru
      _
    // Predicated region
    $region62: #{down_block_forward.1} parent=1 // pred_check
      _
    $region63: #{down_block_forward.1} parent=1 // pred_check_branch
      %65 = sbr.rel (0) target = $region65
    $region64: #{down_block_forward.1} parent=1 // pred_region
      _
    $region65: #{down_block_forward.1} parent=1 // pred_fallthru
      _
    // Predicated region
    $region66: #{down_block_forward.1} parent=1 // pred_check
      _
    $region67: #{down_block_forward.1} parent=1 // pred_check_branch
      %67 = sbr.rel (0) target = $region69
    $region68: #{down_block_forward.1} parent=1 // pred_region
      _
    $region69: #{down_block_forward.1} parent=1 // pred_fallthru
      _
    // Predicated region
    $region70: #{down_block_forward.1} parent=1 // pred_check
      _
    $region71: #{down_block_forward.1} parent=1 // pred_check_branch
      %69 = sbr.rel (0) target = $region73
    $region72: #{down_block_forward.1} parent=1 // pred_region
      %71 = dma.done [#allocation3], 8192
    $region73: #{down_block_forward.1} parent=1 // pred_fallthru
      _
    %v72 = vld [vmem:[%s2] sm:$0xff]
    %v73 = vld [vmem:[%s2 + $0x8] sm:$0x1]
    %v74 = vld [vmem:[%s3] sm:$0x3]
    %v75 = vld [vmem:[%s1] sm:$0xff]
    %v76 = vld [vmem:[%s0] sm:$0xff]
    %v77 = vld [vmem:[%s0 + $0x8] sm:$0xff]
    %80 = vst [vmem:[#allocation1] ss:$2 sm:$0xff] %v76
    %v81 = vld.sshfl [vmem:[#allocation1] sm:$0xff pattern:$0x75316420]
    %v82 = vld.sshfl [vmem:[#allocation1 + $0x8] sm:$0xff pattern:$0x75316420]
    %s83 = scalar_lea.vmem [#allocation1], 16
    %84 = vst [vmem:[%s83] ss:$2 sm:$0xff] %v77
    %v85 = vld.sshfl [vmem:[#allocation1 + $0x10] sm:$0xff pattern:$0x75316420]
    %v86 = vld.sshfl [vmem:[#allocation1 + $0x18] sm:$0xff pattern:$0x75316420]
    %91 = vrot.lane.b32.xlu0 %v81, 127
    %v92 = vpop.permute.xlu0 %91
    %93 = vrot.lane.b32.xlu0 %v85, 127
    %v94 = vpop.permute.xlu0 %93
    %95 = vrot.lane.b32.xlu0 %v82, 127
    %v96 = vpop.permute.xlu0 %95
    %97 = vrot.lane.b32.xlu0 %v86, 127
    %v98 = vpop.permute.xlu0 %97
    %v99 = vlaneseq
    %v100 = vand.u32 %v99, 127
    %vm101 = vcmp.lt.s32.totalorder %v100, 127
    %v102 = vsel %vm101, %v92, %v96
    %v103 = vsel %vm101, %v94, %v98
    %v104 = vsel %vm101, %v96, %v92
    %v105 = vsel %vm101, %v98, %v94
    %v110 = vrot.slane %v104, 4
    %v111 = vrot.slane %v105, 4
    %vm112 = vcmask 1043456
    %v113 = vsel %vm112, %v102, %v110
    %v114 = vsel %vm112, %v103, %v111
    %v117 = vmax.f32 %v76, %v113
    %v118 = vmax.f32 %v77, %v114
    %121 = vst [vmem:[#allocation1] ss:$2 sm:$0xff] %v117
    %v122 = vld.sshfl [vmem:[#allocation1] sm:$0xff pattern:$0x75316420]
    %v123 = vld.sshfl [vmem:[#allocation1 + $0x8] sm:$0xff pattern:$0x75316420]
    %s124 = scalar_lea.vmem [#allocation1], 16
    %125 = vst [vmem:[%s124] ss:$2 sm:$0xff] %v118
    %v126 = vld.sshfl [vmem:[#allocation1 + $0x10] sm:$0xff pattern:$0x75316420]
    %v127 = vld.sshfl [vmem:[#allocation1 + $0x18] sm:$0xff pattern:$0x75316420]
    %132 = vrot.lane.b32.xlu0 %v122, 112
    %v133 = vpop.permute.xlu0 %132
    %134 = vrot.lane.b32.xlu0 %v126, 112
    %v135 = vpop.permute.xlu0 %134
    %136 = vrot.lane.b32.xlu0 %v123, 112
    %v137 = vpop.permute.xlu0 %136
    %138 = vrot.lane.b32.xlu0 %v127, 112
    %v139 = vpop.permute.xlu0 %138
    %vm140 = vcmp.lt.s32.totalorder %v100, 112
    %v141 = vsel %vm140, %v133, %v137
    %v142 = vsel %vm140, %v135, %v139
    %v143 = vsel %vm140, %v137, %v133
    %v144 = vsel %vm140, %v139, %v135
    %v149 = vrot.slane %v143, 4
    %v150 = vrot.slane %v144, 4
    %v151 = vsel %vm112, %v141, %v149
    %v152 = vsel %vm112, %v142, %v150
    %v155 = vmax.f32 %v117, %v151
    %v156 = vmax.f32 %v118, %v152
    %v157 = vld [vmem:[#allocation2] sm:$0xff]
    %v158 = vld [vmem:[#allocation2 + $0x8] sm:$0xff]
    %v159 = vld [vmem:[#allocation2 + $0x10] sm:$0xff]
    %v160 = vld [vmem:[#allocation2 + $0x18] sm:$0xff]
    %v161 = vld [vmem:[#allocation2 + $0x20] sm:$0xff]
    %v162 = vld [vmem:[#allocation2 + $0x28] sm:$0xff]
    %v163 = vld [vmem:[#allocation2 + $0x30] sm:$0xff]
    %v164 = vld [vmem:[#allocation2 + $0x38] sm:$0xff]
    %v165 = vld [vmem:[#allocation2 + $0x40] sm:$0xff]
    %v166 = vld [vmem:[#allocation2 + $0x48] sm:$0xff]
    %v167 = vld [vmem:[#allocation2 + $0x50] sm:$0xff]
    %v168 = vld [vmem:[#allocation2 + $0x58] sm:$0xff]
    %v169 = vld [vmem:[#allocation2 + $0x60] sm:$0xff]
    %v170 = vld [vmem:[#allocation2 + $0x68] sm:$0xff]
    %v171 = vld [vmem:[#allocation2 + $0x70] sm:$0xff]
    %v172 = vld [vmem:[#allocation2 + $0x78] sm:$0xff]
    %v173 = vld [vmem:[#allocation2 + $0x80] sm:$0xff]
    %v174 = vld [vmem:[#allocation2 + $0x88] sm:$0xff]
    %v175 = vld [vmem:[#allocation2 + $0x90] sm:$0xff]
    %v176 = vld [vmem:[#allocation2 + $0x98] sm:$0xff]
    %v177 = vld [vmem:[#allocation2 + $0xa0] sm:$0xff]
    %v178 = vld [vmem:[#allocation2 + $0xa8] sm:$0xff]
    %v179 = vld [vmem:[#allocation2 + $0xb0] sm:$0xff]
    %v180 = vld [vmem:[#allocation2 + $0xb8] sm:$0xff]
    %v181 = vld [vmem:[#allocation2 + $0xc0] sm:$0xff]
    %v182 = vld [vmem:[#allocation2 + $0xc8] sm:$0xff]
    %v183 = vld [vmem:[#allocation2 + $0xd0] sm:$0xff]
    %v184 = vld [vmem:[#allocation2 + $0xd8] sm:$0xff]
    %v185 = vld [vmem:[#allocation2 + $0xe0] sm:$0xff]
    %v186 = vld [vmem:[#allocation2 + $0xe8] sm:$0xff]
    %v187 = vld [vmem:[#allocation2 + $0xf0] sm:$0xff]
    %v188 = vld [vmem:[#allocation2 + $0xf8] sm:$0xff]
    %s189 = scalar_lea.vmem [#allocation2], 256
    %v190 = vld [vmem:[%s189] sm:$0xff]
    %v191 = vld [vmem:[%s189 + $0x8] sm:$0xff]
    %v192 = vld [vmem:[%s189 + $0x10] sm:$0xff]
    %v193 = vld [vmem:[%s189 + $0x18] sm:$0xff]
    %v194 = vld [vmem:[%s189 + $0x20] sm:$0xff]
    %v195 = vld [vmem:[%s189 + $0x28] sm:$0xff]
    %v196 = vld [vmem:[%s189 + $0x30] sm:$0xff]
    %v197 = vld [vmem:[%s189 + $0x38] sm:$0xff]
    %v198 = vld [vmem:[%s189 + $0x40] sm:$0xff]
    %v199 = vld [vmem:[%s189 + $0x48] sm:$0xff]
    %v200 = vld [vmem:[%s189 + $0x50] sm:$0xff]
    %v201 = vld [vmem:[%s189 + $0x58] sm:$0xff]
    %v202 = vld [vmem:[%s189 + $0x60] sm:$0xff]
    %v203 = vld [vmem:[%s189 + $0x68] sm:$0xff]
    %v204 = vld [vmem:[%s189 + $0x70] sm:$0xff]
    %v205 = vld [vmem:[%s189 + $0x78] sm:$0xff]
    %v206 = vld [vmem:[%s189 + $0x80] sm:$0xff]
    %v207 = vld [vmem:[%s189 + $0x88] sm:$0xff]
    %v208 = vld [vmem:[%s189 + $0x90] sm:$0xff]
    %v209 = vld [vmem:[%s189 + $0x98] sm:$0xff]
    %v210 = vld [vmem:[%s189 + $0xa0] sm:$0xff]
    %v211 = vld [vmem:[%s189 + $0xa8] sm:$0xff]
    %v212 = vld [vmem:[%s189 + $0xb0] sm:$0xff]
    %v213 = vld [vmem:[%s189 + $0xb8] sm:$0xff]
    %v214 = vld [vmem:[%s189 + $0xc0] sm:$0xff]
    %v215 = vld [vmem:[%s189 + $0xc8] sm:$0xff]
    %v216 = vld [vmem:[%s189 + $0xd0] sm:$0xff]
    %v217 = vld [vmem:[%s189 + $0xd8] sm:$0xff]
    %v218 = vld [vmem:[%s189 + $0xe0] sm:$0xff]
    %v219 = vld [vmem:[%s189 + $0xe8] sm:$0xff]
    %v220 = vld [vmem:[%s189 + $0xf0] sm:$0xff]
    %v221 = vld [vmem:[%s189 + $0xf8] sm:$0xff]
    %223 = vst [vmem:[#allocation1] ss:$2 sm:$0xff] %v156
    %v224 = vld.sshfl [vmem:[#allocation1] sm:$0xff pattern:$0x75316420]
    %v225 = vld.sshfl [vmem:[#allocation1 + $0x8] sm:$0xff pattern:$0x75316420]
    %228 = vmatpush.msra.mxu0 %v205
    %229 = vmatpush.msra.mxu0 %v204
    %230 = vmatpush.msra.mxu0 %v203
    %231 = vmatpush.msra.mxu0 %v202
    %232 = vmatpush.msra.mxu0 %v201
    %233 = vmatpush.msra.mxu0 %v200
    %234 = vmatpush.msra.mxu0 %v199
    %235 = vmatpush.msra.mxu0 %v198
    %236 = vmatpush.msra.mxu0 %v197
    %237 = vmatpush.msra.mxu0 %v196
    %238 = vmatpush.msra.mxu0 %v195
    %239 = vmatpush.msra.mxu0 %v194
    %240 = vmatpush.msra.mxu0 %v193
    %241 = vmatpush.msra.mxu0 %v192
    %242 = vmatpush.msra.mxu0 %v191
    %243 = vmatpush.msra.mxu0 %v190
    %244 = vmatmul.f32.gmra.mxu0 %v224
    %v245 = vpop.f32.mrf.mxu0
    %v246 = vadd.f32 0.0, %v245
    %247 = vdwg.mxu0
    %248 = vmatpush.msra.mxu0 %v221
    %249 = vmatpush.msra.mxu0 %v220
    %250 = vmatpush.msra.mxu0 %v219
    %251 = vmatpush.msra.mxu0 %v218
    %252 = vmatpush.msra.mxu0 %v217
    %253 = vmatpush.msra.mxu0 %v216
    %254 = vmatpush.msra.mxu0 %v215
    %255 = vmatpush.msra.mxu0 %v214
    %256 = vmatpush.msra.mxu0 %v213
    %257 = vmatpush.msra.mxu0 %v212
    %258 = vmatpush.msra.mxu0 %v211
    %259 = vmatpush.msra.mxu0 %v210
    %260 = vmatpush.msra.mxu0 %v209
    %261 = vmatpush.msra.mxu0 %v208
    %262 = vmatpush.msra.mxu0 %v207
    %263 = vmatpush.msra.mxu0 %v206
    %264 = vmatmul.f32.gmra.mxu0 %v225
    %v265 = vpop.f32.mrf.mxu0
    %v266 = vadd.f32 %v246, %v265
    %267 = vdwg.mxu0
    %269 = vst [vmem:[#allocation1] ss:$2 sm:$0xff] %v155
    %v270 = vld.sshfl [vmem:[#allocation1] sm:$0xff pattern:$0x75316420]
    %v271 = vld.sshfl [vmem:[#allocation1 + $0x8] sm:$0xff pattern:$0x75316420]
    %274 = vmatpush.msra.mxu0 %v172
    %275 = vmatpush.msra.mxu0 %v171
    %276 = vmatpush.msra.mxu0 %v170
    %277 = vmatpush.msra.mxu0 %v169
    %278 = vmatpush.msra.mxu0 %v168
    %279 = vmatpush.msra.mxu0 %v167
    %280 = vmatpush.msra.mxu0 %v166
    %281 = vmatpush.msra.mxu0 %v165
    %282 = vmatpush.msra.mxu0 %v164
    %283 = vmatpush.msra.mxu0 %v163
    %284 = vmatpush.msra.mxu0 %v162
    %285 = vmatpush.msra.mxu0 %v161
    %286 = vmatpush.msra.mxu0 %v160
    %287 = vmatpush.msra.mxu0 %v159
    %288 = vmatpush.msra.mxu0 %v158
    %289 = vmatpush.msra.mxu0 %v157
    %290 = vmatmul.f32.gmra.mxu0 %v270
    %v291 = vpop.f32.mrf.mxu0
    %v292 = vadd.f32 %v266, %v291
    %293 = vdwg.mxu0
    %294 = vmatpush.msra.mxu0 %v188
    %295 = vmatpush.msra.mxu0 %v187
    %296 = vmatpush.msra.mxu0 %v186
    %297 = vmatpush.msra.mxu0 %v185
    %298 = vmatpush.msra.mxu0 %v184
    %299 = vmatpush.msra.mxu0 %v183
    %300 = vmatpush.msra.mxu0 %v182
    %301 = vmatpush.msra.mxu0 %v181
    %302 = vmatpush.msra.mxu0 %v180
    %303 = vmatpush.msra.mxu0 %v179
    %304 = vmatpush.msra.mxu0 %v178
    %305 = vmatpush.msra.mxu0 %v177
    %306 = vmatpush.msra.mxu0 %v176
    %307 = vmatpush.msra.mxu0 %v175
    %308 = vmatpush.msra.mxu0 %v174
    %309 = vmatpush.msra.mxu0 %v173
    %310 = vmatmul.f32.gmra.mxu0 %v271
    %v311 = vpop.f32.mrf.mxu0
    %v312 = vadd.f32 %v292, %v311
    %313 = vdwg.mxu0
    %314 = vrot.lane.b32.xlu0 %v312, 9
    %v315 = vpop.permute.xlu0 %314
    %v316 = vperm.slane %v72, 0
    %v317 = vmul.f32 %v315, %v316
    %318 = vrot.lane.b32.xlu0 %v312, 8
    %v319 = vpop.permute.xlu0 %318
    %v320 = vperm.slane %v72, 1
    %v321 = vmul.f32 %v319, %v320
    %322 = vrot.lane.b32.xlu0 %v312, 7
    %v323 = vpop.permute.xlu0 %322
    %v324 = vperm.slane %v72, 2
    %v325 = vmul.f32 %v323, %v324
    %326 = vrot.lane.b32.xlu0 %v312, 1
    %v327 = vpop.permute.xlu0 %326
    %v328 = vperm.slane %v72, 3
    %v329 = vmul.f32 %v327, %v328
    %330 = vrot.lane.b32.xlu0 %v312, 127
    %v331 = vpop.permute.xlu0 %330
    %v332 = vperm.slane %v72, 5
    %v333 = vmul.f32 %v331, %v332
    %334 = vrot.lane.b32.xlu0 %v312, 121
    %v335 = vpop.permute.xlu0 %334
    %v336 = vperm.slane %v72, 6
    %v337 = vmul.f32 %v335, %v336
    %338 = vrot.lane.b32.xlu0 %v312, 120
    %v339 = vpop.permute.xlu0 %338
    %v340 = vperm.slane %v72, 7
    %v341 = vmul.f32 %v339, %v340
    %342 = vrot.lane.b32.xlu0 %v312, 119
    %v343 = vpop.permute.xlu0 %342
    %v344 = vperm.slane %v73, 0
    %v345 = vmul.f32 %v343, %v344
    %v347 = vrot.slane %v321, 4
    %v350 = vrot.slane %v329, 4
    %v353 = vrot.slane %v333, 4
    %v356 = vrot.slane %v341, 4
    %v358 = vsel %vm112, %v317, %v347
    %v359 = vsel %vm112, %v325, %v350
    %v360 = vsel %vm112, %v312, %v353
    %v361 = vsel %vm112, %v337, %v356
    %v362 = vld [vmem:[%s5] sm:$0xf]
    %vm363 = vcmask 293888
    %v365 = vsel %vm363, %v362, 0
    %v368 = vsel %vm112, %v345, 0
    %370 = vmatpush.msra.mxu0 0.0
    %371 = vmatpush.msra.mxu0 0.0
    %372 = vmatpush.msra.mxu0 0.0
    %373 = vmatpush.msra.mxu0 0.0
    %374 = vmatpush.msra.mxu0 0.0
    %375 = vmatpush.msra.mxu0 0.0
    %376 = vmatpush.msra.mxu0 0.0
    %377 = vmatpush.msra.mxu0 0.0
    %378 = vmatpush.msra.mxu0 0.0
    %379 = vmatpush.msra.mxu0 0.0
    %380 = vmatpush.msra.mxu0 0.0
    %381 = vmatpush.msra.mxu0 %v368
    %382 = vmatpush.msra.mxu0 %v361
    %383 = vmatpush.msra.mxu0 %v360
    %384 = vmatpush.msra.mxu0 %v359
    %385 = vmatpush.msra.mxu0 %v358
    %386 = vmatmul.f32.gmra.mxu0 %v365
    %v387 = vpop.f32.mrf.mxu0
    %v388 = vadd.f32 0.0, %v387
    %389 = vdwg.mxu0
    %v390 = vld [vmem:[%s6] sm:$0xf]
    %v391 = vld [vmem:[%s7] sm:$0xf]
    %v392 = vperm.slane %v74, 0
    %v393 = vmul.f32 %v388, %v392
    %v394 = vsel %vm112, %v393, 0.0
    %395 = vadd.xlane.f32.xlu0 %v394
    %v396 = vpop.xlane.xlu0 %395
    %v397 = vrot.slane %v396, 4
    %v398 = vadd.f32 %v396, %v397
    %v399 = vrot.slane %v398, 2
    %v400 = vadd.f32 %v398, %v399
    %v401 = vrot.slane %v400, 1
    %v402 = vadd.f32 %v400, %v401
    %s403 = vtos %v402
    %s404 = smul.f32 %s403, 0.00390625
    %v405 = vstv %s404
    %v406 = vsub.f32 %v388, %v405
    %v407 = vmul.f32 %v406, %v392
    %v408 = vmul.f32 %v407, %v407
    %v409 = vsel %vm112, %v408, 0.0
    %410 = vadd.xlane.f32.xlu0 %v409
    %v411 = vpop.xlane.xlu0 %410
    %v412 = vrot.slane %v411, 4
    %v413 = vadd.f32 %v411, %v412
    %v414 = vrot.slane %v413, 2
    %v415 = vadd.f32 %v413, %v414
    %v416 = vrot.slane %v415, 1
    %v417 = vadd.f32 %v415, %v416
    %s418 = vtos %v417
    %s419 = smul.f32 %s418, 0.00390625
    %s420 = sadd.f32 %s419, 1e-05
    %v421 = vstv %s420
    %v422 = vrsqrt.pop %v421
    %v423 = vmul.f32 %v422, %v421
    %v424 = vmul.f32 %v423, %v422
    %v425 = vmul.f32 0.5, %v424
    %v426 = vsub.f32 1.5, %v425
    %v427 = vmul.f32 %v422, %v426
    %vm428 = vweird.f32 %v421
    %vm429 = vweird.f32 %v422
    %vm430 = vmor %vm428, %vm429
    %v431 = vsel %vm430, %v422, %v427
    %s432 = vtos %v431
    %v433 = vstv %s432
    %v434 = vmul.f32 %v390, %v433
    %v435 = vmul.f32 %v405, %v434
    %v436 = vsub.f32 %v391, %v435
    %438 = vset.pattern.permute.xlu0 0
    %439 = vperm.xlu0 %438, %v434
    %v440 = vpop.permute.xlu0 %439
    %v442 = vmul.f32 %v392, %v440
    %v443 = vadd.f32 %v442, 0.0
    %445 = vset.pattern.permute.xlu0 0
    %446 = vperm.xlu0 %445, %v436
    %v447 = vpop.permute.xlu0 %446
    %v449 = vmul.f32 %v392, %v447
    %v450 = vadd.f32 %v449, 0.0
    %v451 = vperm.slane %v74, 1
    %v452 = vmul.f32 %v388, %v451
    %v453 = vsel %vm112, %v452, 0.0
    %454 = vadd.xlane.f32.xlu0 %v453
    %v455 = vpop.xlane.xlu0 %454
    %v456 = vrot.slane %v455, 4
    %v457 = vadd.f32 %v455, %v456
    %v458 = vrot.slane %v457, 2
    %v459 = vadd.f32 %v457, %v458
    %v460 = vrot.slane %v459, 1
    %v461 = vadd.f32 %v459, %v460
    %s462 = vtos %v461
    %s463 = smul.f32 %s462, 0.00390625
    %v464 = vstv %s463
    %v465 = vsub.f32 %v388, %v464
    %v466 = vmul.f32 %v465, %v451
    %v467 = vmul.f32 %v466, %v466
    %v468 = vsel %vm112, %v467, 0.0
    %469 = vadd.xlane.f32.xlu0 %v468
    %v470 = vpop.xlane.xlu0 %469
    %v471 = vrot.slane %v470, 4
    %v472 = vadd.f32 %v470, %v471
    %v473 = vrot.slane %v472, 2
    %v474 = vadd.f32 %v472, %v473
    %v475 = vrot.slane %v474, 1
    %v476 = vadd.f32 %v474, %v475
    %s477 = vtos %v476
    %s478 = smul.f32 %s477, 0.00390625
    %s479 = sadd.f32 %s478, 1e-05
    %v480 = vstv %s479
    %v481 = vrsqrt.pop %v480
    %v482 = vmul.f32 %v481, %v480
    %v483 = vmul.f32 %v482, %v481
    %v484 = vmul.f32 0.5, %v483
    %v485 = vsub.f32 1.5, %v484
    %v486 = vmul.f32 %v481, %v485
    %vm487 = vweird.f32 %v480
    %vm488 = vweird.f32 %v481
    %vm489 = vmor %vm487, %vm488
    %v490 = vsel %vm489, %v481, %v486
    %s491 = vtos %v490
    %v492 = vstv %s491
    %v493 = vmul.f32 %v390, %v492
    %v494 = vmul.f32 %v464, %v493
    %v495 = vsub.f32 %v391, %v494
    %497 = vset.pattern.permute.xlu0 0
    %498 = vperm.xlu0 %497, %v493
    %v499 = vpop.permute.xlu0 %498
    %v501 = vmul.f32 %v451, %v499
    %v502 = vadd.f32 %v443, %v501
    %504 = vset.pattern.permute.xlu0 0
    %505 = vperm.xlu0 %504, %v495
    %v506 = vpop.permute.xlu0 %505
    %v508 = vmul.f32 %v451, %v506
    %v509 = vadd.f32 %v450, %v508
    %v510 = vmul.f32 %v388, %v502
    %v511 = vadd.f32 %v510, %v509
    %v512 = vxor.u32 %v511, 2147483648
    %v513 = vmul.f32 %v512, 1.442695
    %v514 = vpow.pop %v513
    %v515 = vadd.f32 %v514, 1.0
    %v516 = vrcp.pop %v515
    %v517 = vmul.f32 %v515, %v516
    %v518 = vsub.f32 1.0, %v517
    %v519 = vmul.f32 %v516, %v518
    %v520 = vadd.f32 %v516, %v519
    %vm521 = vweird.f32 %v515
    %vm522 = vweird.f32 %v516
    %vm523 = vmor %vm521, %vm522
    %v524 = vsel %vm523, %v516, %v520
    %v525 = vand.u32 2147483647, %v515
    %vm526 = vcmp.eq.f32.partialorder %v525, 8.507059e+37
    %v527 = vand.u32 %v515, 2147483648
    %v528 = vor.u32 1.1754944e-38, %v527
    %v529 = vsel %vm526, %v528, %v524
    %v530 = vmul.f32 1.0, %v529
    %v531 = vmul.f32 %v511, %v530
    %532 = vrot.lane.b32.xlu0 %v531, 9
    %v533 = vpop.permute.xlu0 %532
    %v534 = vmul.f32 %v533, %v316
    %535 = vrot.lane.b32.xlu0 %v531, 8
    %v536 = vpop.permute.xlu0 %535
    %v537 = vmul.f32 %v536, %v320
    %538 = vrot.lane.b32.xlu0 %v531, 7
    %v539 = vpop.permute.xlu0 %538
    %v540 = vmul.f32 %v539, %v324
    %541 = vrot.lane.b32.xlu0 %v531, 1
    %v542 = vpop.permute.xlu0 %541
    %v543 = vmul.f32 %v542, %v328
    %544 = vrot.lane.b32.xlu0 %v531, 127
    %v545 = vpop.permute.xlu0 %544
    %v546 = vmul.f32 %v545, %v332
    %547 = vrot.lane.b32.xlu0 %v531, 121
    %v548 = vpop.permute.xlu0 %547
    %v549 = vmul.f32 %v548, %v336
    %550 = vrot.lane.b32.xlu0 %v531, 120
    %v551 = vpop.permute.xlu0 %550
    %v552 = vmul.f32 %v551, %v340
    %553 = vrot.lane.b32.xlu0 %v531, 119
    %v554 = vpop.permute.xlu0 %553
    %v555 = vmul.f32 %v554, %v344
    %v557 = vrot.slane %v537, 4
    %v560 = vrot.slane %v543, 4
    %v563 = vrot.slane %v546, 4
    %v566 = vrot.slane %v552, 4
    %v568 = vsel %vm112, %v534, %v557
    %v569 = vsel %vm112, %v540, %v560
    %v570 = vsel %vm112, %v531, %v563
    %v571 = vsel %vm112, %v549, %v566
    %v572 = vld [vmem:[%s8] sm:$0xf]
    %v574 = vsel %vm363, %v572, 0
    %v577 = vsel %vm112, %v555, 0
    %579 = vmatpush.msra.mxu0 0.0
    %580 = vmatpush.msra.mxu0 0.0
    %581 = vmatpush.msra.mxu0 0.0
    %582 = vmatpush.msra.mxu0 0.0
    %583 = vmatpush.msra.mxu0 0.0
    %584 = vmatpush.msra.mxu0 0.0
    %585 = vmatpush.msra.mxu0 0.0
    %586 = vmatpush.msra.mxu0 0.0
    %587 = vmatpush.msra.mxu0 0.0
    %588 = vmatpush.msra.mxu0 0.0
    %589 = vmatpush.msra.mxu0 0.0
    %590 = vmatpush.msra.mxu0 %v577
    %591 = vmatpush.msra.mxu0 %v571
    %592 = vmatpush.msra.mxu0 %v570
    %593 = vmatpush.msra.mxu0 %v569
    %594 = vmatpush.msra.mxu0 %v568
    %595 = vmatmul.f32.gmra.mxu0 %v574
    %v596 = vpop.f32.mrf.mxu0
    %v597 = vadd.f32 0.0, %v596
    %598 = vdwg.mxu0
    %v599 = vld [vmem:[%s9] sm:$0xf]
    %v600 = vld [vmem:[%s10] sm:$0xf]
    %v601 = vmul.f32 %v597, %v392
    %v602 = vsel %vm112, %v601, 0.0
    %603 = vadd.xlane.f32.xlu0 %v602
    %v604 = vpop.xlane.xlu0 %603
    %v605 = vrot.slane %v604, 4
    %v606 = vadd.f32 %v604, %v605
    %v607 = vrot.slane %v606, 2
    %v608 = vadd.f32 %v606, %v607
    %v609 = vrot.slane %v608, 1
    %v610 = vadd.f32 %v608, %v609
    %s611 = vtos %v610
    %s612 = smul.f32 %s611, 0.00390625
    %v613 = vstv %s612
    %v614 = vsub.f32 %v597, %v613
    %v615 = vmul.f32 %v614, %v392
    %v616 = vmul.f32 %v615, %v615
    %v617 = vsel %vm112, %v616, 0.0
    %618 = vadd.xlane.f32.xlu0 %v617
    %v619 = vpop.xlane.xlu0 %618
    %v620 = vrot.slane %v619, 4
    %v621 = vadd.f32 %v619, %v620
    %v622 = vrot.slane %v621, 2
    %v623 = vadd.f32 %v621, %v622
    %v624 = vrot.slane %v623, 1
    %v625 = vadd.f32 %v623, %v624
    %s626 = vtos %v625
    %s627 = smul.f32 %s626, 0.00390625
    %s628 = sadd.f32 %s627, 1e-05
    %v629 = vstv %s628
    %v630 = vrsqrt.pop %v629
    %v631 = vmul.f32 %v630, %v629
    %v632 = vmul.f32 %v631, %v630
    %v633 = vmul.f32 0.5, %v632
    %v634 = vsub.f32 1.5, %v633
    %v635 = vmul.f32 %v630, %v634
    %vm636 = vweird.f32 %v629
    %vm637 = vweird.f32 %v630
    %vm638 = vmor %vm636, %vm637
    %v639 = vsel %vm638, %v630, %v635
    %s640 = vtos %v639
    %v641 = vstv %s640
    %v642 = vmul.f32 %v599, %v641
    %v643 = vmul.f32 %v613, %v642
    %v644 = vsub.f32 %v600, %v643
    %646 = vset.pattern.permute.xlu0 0
    %647 = vperm.xlu0 %646, %v642
    %v648 = vpop.permute.xlu0 %647
    %v650 = vmul.f32 %v392, %v648
    %v651 = vadd.f32 %v650, 0.0
    %653 = vset.pattern.permute.xlu0 0
    %654 = vperm.xlu0 %653, %v644
    %v655 = vpop.permute.xlu0 %654
    %v657 = vmul.f32 %v392, %v655
    %v658 = vadd.f32 %v657, 0.0
    %v659 = vmul.f32 %v597, %v451
    %v660 = vsel %vm112, %v659, 0.0
    %661 = vadd.xlane.f32.xlu0 %v660
    %v662 = vpop.xlane.xlu0 %661
    %v663 = vrot.slane %v662, 4
    %v664 = vadd.f32 %v662, %v663
    %v665 = vrot.slane %v664, 2
    %v666 = vadd.f32 %v664, %v665
    %v667 = vrot.slane %v666, 1
    %v668 = vadd.f32 %v666, %v667
    %s669 = vtos %v668
    %s670 = smul.f32 %s669, 0.00390625
    %v671 = vstv %s670
    %v672 = vsub.f32 %v597, %v671
    %v673 = vmul.f32 %v672, %v451
    %v674 = vmul.f32 %v673, %v673
    %v675 = vsel %vm112, %v674, 0.0
    %676 = vadd.xlane.f32.xlu0 %v675
    %v677 = vpop.xlane.xlu0 %676
    %v678 = vrot.slane %v677, 4
    %v679 = vadd.f32 %v677, %v678
    %v680 = vrot.slane %v679, 2
    %v681 = vadd.f32 %v679, %v680
    %v682 = vrot.slane %v681, 1
    %v683 = vadd.f32 %v681, %v682
    %s684 = vtos %v683
    %s685 = smul.f32 %s684, 0.00390625
    %s686 = sadd.f32 %s685, 1e-05
    %v687 = vstv %s686
    %v688 = vrsqrt.pop %v687
    %v689 = vmul.f32 %v688, %v687
    %v690 = vmul.f32 %v689, %v688
    %v691 = vmul.f32 0.5, %v690
    %v692 = vsub.f32 1.5, %v691
    %v693 = vmul.f32 %v688, %v692
    %vm694 = vweird.f32 %v687
    %vm695 = vweird.f32 %v688
    %vm696 = vmor %vm694, %vm695
    %v697 = vsel %vm696, %v688, %v693
    %s698 = vtos %v697
    %v699 = vstv %s698
    %v700 = vmul.f32 %v599, %v699
    %v701 = vmul.f32 %v671, %v700
    %v702 = vsub.f32 %v600, %v701
    %704 = vset.pattern.permute.xlu0 0
    %705 = vperm.xlu0 %704, %v700
    %v706 = vpop.permute.xlu0 %705
    %v708 = vmul.f32 %v451, %v706
    %v709 = vadd.f32 %v651, %v708
    %711 = vset.pattern.permute.xlu0 0
    %712 = vperm.xlu0 %711, %v702
    %v713 = vpop.permute.xlu0 %712
    %v715 = vmul.f32 %v451, %v713
    %v716 = vadd.f32 %v658, %v715
    %v717 = vmul.f32 %v597, %v709
    %v718 = vadd.f32 %v717, %v716
    %v719 = vadd.f32 %v312, %v718
    %v720 = vxor.u32 %v719, 2147483648
    %v721 = vmul.f32 %v720, 1.442695
    %v722 = vpow.pop %v721
    %v723 = vadd.f32 %v722, 1.0
    %v724 = vrcp.pop %v723
    %v725 = vmul.f32 %v723, %v724
    %v726 = vsub.f32 1.0, %v725
    %v727 = vmul.f32 %v724, %v726
    %v728 = vadd.f32 %v724, %v727
    %vm729 = vweird.f32 %v723
    %vm730 = vweird.f32 %v724
    %vm731 = vmor %vm729, %vm730
    %v732 = vsel %vm731, %v724, %v728
    %v733 = vand.u32 2147483647, %v723
    %vm734 = vcmp.eq.f32.partialorder %v733, 8.507059e+37
    %v735 = vand.u32 %v723, 2147483648
    %v736 = vor.u32 1.1754944e-38, %v735
    %v737 = vsel %vm734, %v736, %v732
    %v738 = vmul.f32 1.0, %v737
    %v739 = vmul.f32 %v719, %v738
    %740 = vrot.lane.b32.xlu0 %v739, 9
    %v741 = vpop.permute.xlu0 %740
    %v742 = vmul.f32 %v741, %v316
    %743 = vrot.lane.b32.xlu0 %v739, 8
    %v744 = vpop.permute.xlu0 %743
    %v745 = vmul.f32 %v744, %v320
    %746 = vrot.lane.b32.xlu0 %v739, 7
    %v747 = vpop.permute.xlu0 %746
    %v748 = vmul.f32 %v747, %v324
    %749 = vrot.lane.b32.xlu0 %v739, 1
    %v750 = vpop.permute.xlu0 %749
    %v751 = vmul.f32 %v750, %v328
    %752 = vrot.lane.b32.xlu0 %v739, 127
    %v753 = vpop.permute.xlu0 %752
    %v754 = vmul.f32 %v753, %v332
    %755 = vrot.lane.b32.xlu0 %v739, 121
    %v756 = vpop.permute.xlu0 %755
    %v757 = vmul.f32 %v756, %v336
    %758 = vrot.lane.b32.xlu0 %v739, 120
    %v759 = vpop.permute.xlu0 %758
    %v760 = vmul.f32 %v759, %v340
    %761 = vrot.lane.b32.xlu0 %v739, 119
    %v762 = vpop.permute.xlu0 %761
    %v763 = vmul.f32 %v762, %v344
    %v765 = vrot.slane %v745, 4
    %v768 = vrot.slane %v751, 4
    %v771 = vrot.slane %v754, 4
    %v774 = vrot.slane %v760, 4
    %v776 = vsel %vm112, %v742, %v765
    %v777 = vsel %vm112, %v748, %v768
    %v778 = vsel %vm112, %v739, %v771
    %v779 = vsel %vm112, %v757, %v774
    %v780 = vld [vmem:[%s11] sm:$0xff]
    %v782 = vsel %vm363, %v780, 0
    %v785 = vsel %vm112, %v763, 0
    %787 = vmatpush.msra.mxu0 0.0
    %788 = vmatpush.msra.mxu0 0.0
    %789 = vmatpush.msra.mxu0 0.0
    %790 = vmatpush.msra.mxu0 0.0
    %791 = vmatpush.msra.mxu0 0.0
    %792 = vmatpush.msra.mxu0 0.0
    %793 = vmatpush.msra.mxu0 0.0
    %794 = vmatpush.msra.mxu0 0.0
    %795 = vmatpush.msra.mxu0 0.0
    %796 = vmatpush.msra.mxu0 0.0
    %797 = vmatpush.msra.mxu0 0.0
    %798 = vmatpush.msra.mxu0 %v785
    %799 = vmatpush.msra.mxu0 %v779
    %800 = vmatpush.msra.mxu0 %v778
    %801 = vmatpush.msra.mxu0 %v777
    %802 = vmatpush.msra.mxu0 %v776
    %803 = vmatmul.f32.gmra.mxu0 %v782
    %v804 = vpop.f32.mrf.mxu0
    %v805 = vadd.f32 0.0, %v804
    %806 = vdwg.mxu0
    %v807 = vld [vmem:[%s12] sm:$0xff]
    %v808 = vld [vmem:[%s13] sm:$0xff]
    %v809 = vmul.f32 %v805, %v392
    %810 = vadd.xlane.f32.xlu0 %v809
    %v811 = vpop.xlane.xlu0 %810
    %v812 = vrot.slane %v811, 4
    %v813 = vadd.f32 %v811, %v812
    %v814 = vrot.slane %v813, 2
    %v815 = vadd.f32 %v813, %v814
    %v816 = vrot.slane %v815, 1
    %v817 = vadd.f32 %v815, %v816
    %s818 = vtos %v817
    %s819 = smul.f32 %s818, 0.001953125
    %v820 = vstv %s819
    %v821 = vsub.f32 %v805, %v820
    %v822 = vmul.f32 %v821, %v392
    %v823 = vmul.f32 %v822, %v822
    %824 = vadd.xlane.f32.xlu0 %v823
    %v825 = vpop.xlane.xlu0 %824
    %v826 = vrot.slane %v825, 4
    %v827 = vadd.f32 %v825, %v826
    %v828 = vrot.slane %v827, 2
    %v829 = vadd.f32 %v827, %v828
    %v830 = vrot.slane %v829, 1
    %v831 = vadd.f32 %v829, %v830
    %s832 = vtos %v831
    %s833 = smul.f32 %s832, 0.001953125
    %s834 = sadd.f32 %s833, 1e-05
    %v835 = vstv %s834
    %v836 = vrsqrt.pop %v835
    %v837 = vmul.f32 %v836, %v835
    %v838 = vmul.f32 %v837, %v836
    %v839 = vmul.f32 0.5, %v838
    %v840 = vsub.f32 1.5, %v839
    %v841 = vmul.f32 %v836, %v840
    %vm842 = vweird.f32 %v835
    %vm843 = vweird.f32 %v836
    %vm844 = vmor %vm842, %vm843
    %v845 = vsel %vm844, %v836, %v841
    %s846 = vtos %v845
    %v847 = vstv %s846
    %v848 = vmul.f32 %v807, %v847
    %v849 = vmul.f32 %v820, %v848
    %v850 = vsub.f32 %v808, %v849
    %852 = vset.pattern.permute.xlu0 0
    %853 = vperm.xlu0 %852, %v848
    %v854 = vpop.permute.xlu0 %853
    %v856 = vmul.f32 %v392, %v854
    %v857 = vadd.f32 %v856, 0.0
    %859 = vset.pattern.permute.xlu0 0
    %860 = vperm.xlu0 %859, %v850
    %v861 = vpop.permute.xlu0 %860
    %v863 = vmul.f32 %v392, %v861
    %v864 = vadd.f32 %v863, 0.0
    %v865 = vmul.f32 %v805, %v451
    %866 = vadd.xlane.f32.xlu0 %v865
    %v867 = vpop.xlane.xlu0 %866
    %v868 = vrot.slane %v867, 4
    %v869 = vadd.f32 %v867, %v868
    %v870 = vrot.slane %v869, 2
    %v871 = vadd.f32 %v869, %v870
    %v872 = vrot.slane %v871, 1
    %v873 = vadd.f32 %v871, %v872
    %s874 = vtos %v873
    %s875 = smul.f32 %s874, 0.001953125
    %v876 = vstv %s875
    %v877 = vsub.f32 %v805, %v876
    %v878 = vmul.f32 %v877, %v451
    %v879 = vmul.f32 %v878, %v878
    %880 = vadd.xlane.f32.xlu0 %v879
    %v881 = vpop.xlane.xlu0 %880
    %v882 = vrot.slane %v881, 4
    %v883 = vadd.f32 %v881, %v882
    %v884 = vrot.slane %v883, 2
    %v885 = vadd.f32 %v883, %v884
    %v886 = vrot.slane %v885, 1
    %v887 = vadd.f32 %v885, %v886
    %s888 = vtos %v887
    %s889 = smul.f32 %s888, 0.001953125
    %s890 = sadd.f32 %s889, 1e-05
    %v891 = vstv %s890
    %v892 = vrsqrt.pop %v891
    %v893 = vmul.f32 %v892, %v891
    %v894 = vmul.f32 %v893, %v892
    %v895 = vmul.f32 0.5, %v894
    %v896 = vsub.f32 1.5, %v895
    %v897 = vmul.f32 %v892, %v896
    %vm898 = vweird.f32 %v891
    %vm899 = vweird.f32 %v892
    %vm900 = vmor %vm898, %vm899
    %v901 = vsel %vm900, %v892, %v897
    %s902 = vtos %v901
    %v903 = vstv %s902
    %v904 = vmul.f32 %v807, %v903
    %v905 = vmul.f32 %v876, %v904
    %v906 = vsub.f32 %v808, %v905
    %908 = vset.pattern.permute.xlu0 0
    %909 = vperm.xlu0 %908, %v904
    %v910 = vpop.permute.xlu0 %909
    %v912 = vmul.f32 %v451, %v910
    %v913 = vadd.f32 %v857, %v912
    %915 = vset.pattern.permute.xlu0 0
    %916 = vperm.xlu0 %915, %v906
    %v917 = vpop.permute.xlu0 %916
    %v919 = vmul.f32 %v451, %v917
    %v920 = vadd.f32 %v864, %v919
    %v921 = vmul.f32 %v805, %v913
    %v922 = vadd.f32 %v921, %v920
    %v923 = vxor.u32 %v922, 2147483648
    %v924 = vmul.f32 %v923, 1.442695
    %v925 = vpow.pop %v924
    %v926 = vadd.f32 %v925, 1.0
    %v927 = vrcp.pop %v926
    %v928 = vmul.f32 %v926, %v927
    %v929 = vsub.f32 1.0, %v928
    %v930 = vmul.f32 %v927, %v929
    %v931 = vadd.f32 %v927, %v930
    %vm932 = vweird.f32 %v926
    %vm933 = vweird.f32 %v927
    %vm934 = vmor %vm932, %vm933
    %v935 = vsel %vm934, %v927, %v931
    %v936 = vand.u32 2147483647, %v926
    %vm937 = vcmp.eq.f32.partialorder %v936, 8.507059e+37
    %v938 = vand.u32 %v926, 2147483648
    %v939 = vor.u32 1.1754944e-38, %v938
    %v940 = vsel %vm937, %v939, %v935
    %v941 = vmul.f32 1.0, %v940
    %v942 = vmul.f32 %v922, %v941
    %943 = vrot.lane.b32.xlu0 %v942, 9
    %v944 = vpop.permute.xlu0 %943
    %v945 = vmul.f32 %v944, %v316
    %946 = vrot.lane.b32.xlu0 %v942, 8
    %v947 = vpop.permute.xlu0 %946
    %v948 = vmul.f32 %v947, %v320
    %949 = vrot.lane.b32.xlu0 %v942, 7
    %v950 = vpop.permute.xlu0 %949
    %v951 = vmul.f32 %v950, %v324
    %952 = vrot.lane.b32.xlu0 %v942, 1
    %v953 = vpop.permute.xlu0 %952
    %v954 = vmul.f32 %v953, %v328
    %955 = vrot.lane.b32.xlu0 %v942, 127
    %v956 = vpop.permute.xlu0 %955
    %v957 = vmul.f32 %v956, %v332
    %958 = vrot.lane.b32.xlu0 %v942, 121
    %v959 = vpop.permute.xlu0 %958
    %v960 = vmul.f32 %v959, %v336
    %961 = vrot.lane.b32.xlu0 %v942, 120
    %v962 = vpop.permute.xlu0 %961
    %v963 = vmul.f32 %v962, %v340
    %964 = vrot.lane.b32.xlu0 %v942, 119
    %v965 = vpop.permute.xlu0 %964
    %v966 = vmul.f32 %v965, %v344
    %v967 = vld [vmem:[%s14] sm:$0xff]
    %vm968 = vcmask 588800
    %v970 = vsel %vm968, %v967, 0
    %972 = vmatpush.msra.mxu0 0.0
    %973 = vmatpush.msra.mxu0 0.0
    %974 = vmatpush.msra.mxu0 0.0
    %975 = vmatpush.msra.mxu0 0.0
    %976 = vmatpush.msra.mxu0 0.0
    %977 = vmatpush.msra.mxu0 0.0
    %978 = vmatpush.msra.mxu0 0.0
    %979 = vmatpush.msra.mxu0 %v966
    %980 = vmatpush.msra.mxu0 %v963
    %981 = vmatpush.msra.mxu0 %v960
    %982 = vmatpush.msra.mxu0 %v957
    %983 = vmatpush.msra.mxu0 %v942
    %984 = vmatpush.msra.mxu0 %v954
    %985 = vmatpush.msra.mxu0 %v951
    %986 = vmatpush.msra.mxu0 %v948
    %987 = vmatpush.msra.mxu0 %v945
    %988 = vmatmul.f32.gmra.mxu0 %v970
    %v989 = vpop.f32.mrf.mxu0
    %v990 = vadd.f32 0.0, %v989
    %991 = vdwg.mxu0
    %v992 = vld [vmem:[%s15] sm:$0xff]
    %v993 = vld [vmem:[%s16] sm:$0xff]
    %v994 = vmul.f32 %v990, %v392
    %995 = vadd.xlane.f32.xlu0 %v994
    %v996 = vpop.xlane.xlu0 %995
    %v997 = vrot.slane %v996, 4
    %v998 = vadd.f32 %v996, %v997
    %v999 = vrot.slane %v998, 2
    %v1000 = vadd.f32 %v998, %v999
    %v1001 = vrot.slane %v1000, 1
    %v1002 = vadd.f32 %v1000, %v1001
    %s1003 = vtos %v1002
    %s1004 = smul.f32 %s1003, 0.001953125
    %v1005 = vstv %s1004
    %v1006 = vsub.f32 %v990, %v1005
    %v1007 = vmul.f32 %v1006, %v392
    %v1008 = vmul.f32 %v1007, %v1007
    %1009 = vadd.xlane.f32.xlu0 %v1008
    %v1010 = vpop.xlane.xlu0 %1009
    %v1011 = vrot.slane %v1010, 4
    %v1012 = vadd.f32 %v1010, %v1011
    %v1013 = vrot.slane %v1012, 2
    %v1014 = vadd.f32 %v1012, %v1013
    %v1015 = vrot.slane %v1014, 1
    %v1016 = vadd.f32 %v1014, %v1015
    %s1017 = vtos %v1016
    %s1018 = smul.f32 %s1017, 0.001953125
    %s1019 = sadd.f32 %s1018, 1e-05
    %v1020 = vstv %s1019
    %v1021 = vrsqrt.pop %v1020
    %v1022 = vmul.f32 %v1021, %v1020
    %v1023 = vmul.f32 %v1022, %v1021
    %v1024 = vmul.f32 0.5, %v1023
    %v1025 = vsub.f32 1.5, %v1024
    %v1026 = vmul.f32 %v1021, %v1025
    %vm1027 = vweird.f32 %v1020
    %vm1028 = vweird.f32 %v1021
    %vm1029 = vmor %vm1027, %vm1028
    %v1030 = vsel %vm1029, %v1021, %v1026
    %s1031 = vtos %v1030
    %v1032 = vstv %s1031
    %v1033 = vmul.f32 %v992, %v1032
    %v1034 = vmul.f32 %v1005, %v1033
    %v1035 = vsub.f32 %v993, %v1034
    %v1036 = vadd.f32 %v1035, %v75
    %1038 = vset.pattern.permute.xlu0 0
    %1039 = vperm.xlu0 %1038, %v1033
    %v1040 = vpop.permute.xlu0 %1039
    %v1042 = vmul.f32 %v392, %v1040
    %v1043 = vadd.f32 %v1042, 0.0
    %1045 = vset.pattern.permute.xlu0 0
    %1046 = vperm.xlu0 %1045, %v1036
    %v1047 = vpop.permute.xlu0 %1046
    %v1049 = vmul.f32 %v392, %v1047
    %v1050 = vadd.f32 %v1049, 0.0
    %v1051 = vmul.f32 %v990, %v451
    %1052 = vadd.xlane.f32.xlu0 %v1051
    %v1053 = vpop.xlane.xlu0 %1052
    %v1054 = vrot.slane %v1053, 4
    %v1055 = vadd.f32 %v1053, %v1054
    %v1056 = vrot.slane %v1055, 2
    %v1057 = vadd.f32 %v1055, %v1056
    %v1058 = vrot.slane %v1057, 1
    %v1059 = vadd.f32 %v1057, %v1058
    %s1060 = vtos %v1059
    %s1061 = smul.f32 %s1060, 0.001953125
    %v1062 = vstv %s1061
    %v1063 = vsub.f32 %v990, %v1062
    %v1064 = vmul.f32 %v1063, %v451
    %v1065 = vmul.f32 %v1064, %v1064
    %1066 = vadd.xlane.f32.xlu0 %v1065
    %v1067 = vpop.xlane.xlu0 %1066
    %v1068 = vrot.slane %v1067, 4
    %v1069 = vadd.f32 %v1067, %v1068
    %v1070 = vrot.slane %v1069, 2
    %v1071 = vadd.f32 %v1069, %v1070
    %v1072 = vrot.slane %v1071, 1
    %v1073 = vadd.f32 %v1071, %v1072
    %s1074 = vtos %v1073
    %s1075 = smul.f32 %s1074, 0.001953125
    %s1076 = sadd.f32 %s1075, 1e-05
    %v1077 = vstv %s1076
    %v1078 = vrsqrt.pop %v1077
    %v1079 = vmul.f32 %v1078, %v1077
    %v1080 = vmul.f32 %v1079, %v1078
    %v1081 = vmul.f32 0.5, %v1080
    %v1082 = vsub.f32 1.5, %v1081
    %v1083 = vmul.f32 %v1078, %v1082
    %vm1084 = vweird.f32 %v1077
    %vm1085 = vweird.f32 %v1078
    %vm1086 = vmor %vm1084, %vm1085
    %v1087 = vsel %vm1086, %v1078, %v1083
    %s1088 = vtos %v1087
    %v1089 = vstv %s1088
    %v1090 = vmul.f32 %v992, %v1089
    %v1091 = vmul.f32 %v1062, %v1090
    %v1092 = vsub.f32 %v993, %v1091
    %1094 = vrot.lane.b32.xlu0 %v75, 127
    %v1095 = vpop.permute.xlu0 %1094
    %v1097 = vadd.f32 %v1092, %v1095
    %1099 = vset.pattern.permute.xlu0 0
    %1100 = vperm.xlu0 %1099, %v1090
    %v1101 = vpop.permute.xlu0 %1100
    %v1103 = vmul.f32 %v451, %v1101
    %v1104 = vadd.f32 %v1043, %v1103
    %1106 = vset.pattern.permute.xlu0 0
    %1107 = vperm.xlu0 %1106, %v1097
    %v1108 = vpop.permute.xlu0 %1107
    %v1110 = vmul.f32 %v451, %v1108
    %v1111 = vadd.f32 %v1050, %v1110
    %v1112 = vmul.f32 %v990, %v1104
    %v1113 = vadd.f32 %v1112, %v1111
    %1114 = vst [vmem:[%s17] sm:$0xff] %v1113
    // Predicated region
    $region74: #{down_block_forward.1} parent=1 // pred_check
      _
    $region75: #{down_block_forward.1} parent=1 // pred_check_branch
      %1116 = sbr.rel (0) target = $region77
    $region76: #{down_block_forward.1} parent=1 // pred_region
      _
    $region77: #{down_block_forward.1} parent=1 // pred_fallthru
      _
    // Predicated region
    $region78: #{down_block_forward.1} parent=1 // pred_check
      _
    $region79: #{down_block_forward.1} parent=1 // pred_check_branch
      %1118 = sbr.rel (0) target = $region81
    $region80: #{down_block_forward.1} parent=1 // pred_region
      _
    $region81: #{down_block_forward.1} parent=1 // pred_fallthru
      _
    %1119 = vsyncpa [#allocation3], 1

</llo_original>
